<compile_context>
chip_gen: v7x
topology: tpu7x:2x2x1
jax: 0.10.0
libtpu: 0.0.40
codegen_flags: <defaults>
</compile_context>

<pallas_src>
import functools
import math

import jax
import jax.numpy as jnp
from jax.experimental import pallas as pl
from jax.experimental.pallas import tpu as pltpu


def _round_up(x, m):
    return ((x + m - 1) // m) * m


def _tpu_caps():
    """(vmem_capacity_bytes, is_multi_tensorcore_chip) with safe fallbacks."""
    vmem_cap = 64 << 20  # conservative default (v7x per-TC VMEM)
    try:
        info = pltpu.get_tpu_info()
        vmem_cap = int(getattr(info, "vmem_capacity_bytes", vmem_cap))
    except Exception:
        pass
    multi_tc = False
    try:
        kind = jax.devices()[0].device_kind.lower()
        multi_tc = ("v7" in kind) or ("tpu7" in kind)
    except Exception:
        pass
    return vmem_cap, multi_tc


def _self_attn_kernel(x_ref, w_qkv_ref, wu_t_ref, bu_ref, o_ref, *,
                      heads: int, emb: int, seg: int):
    bblk, t, _ = x_ref.shape
    e = emb
    s = e // heads
    dt = x_ref.dtype
    rows = bblk * t

    # (bblk, t, e) -> (bblk*t, e): leading-dim merge only.
    x2 = x_ref[...].reshape(rows, e)

    # ONE fused Q|K|V projection (scale folded into the Q block host-side).
    qkv = jnp.dot(x2, w_qkv_ref[...],
                  preferred_element_type=jnp.float32).astype(dt)  # (rows, 3*seg)

    # Gather each head's (t, s) slab into the batch dimension once per tensor.
    def gather_heads(base):
        parts = [qkv[:, base + h * s: base + (h + 1) * s].reshape(bblk, t, s)
                 for h in range(heads)]
        return jnp.concatenate(parts, axis=0)        # (heads*bblk, t, s)

    qh = gather_heads(0)
    kh = gather_heads(seg)
    vh = gather_heads(2 * seg)

    # Batched scores over all (head, batch) pairs; single softmax (f32).
    scores = jax.lax.dot_general(
        qh, kh, (((2,), (2,)), ((0,), (0,))),
        preferred_element_type=jnp.float32)          # (heads*bblk, t, t)
    scores = scores - jnp.max(scores, axis=-1, keepdims=True)
    p = jnp.exp(scores)
    p = p * pl.reciprocal(jnp.sum(p, axis=-1, keepdims=True), approx=False)

    # Batched PV matmul.
    oh = jax.lax.dot_general(
        p.astype(dt), vh, (((2,), (1,)), ((0,), (0,))),
        preferred_element_type=jnp.float32).astype(dt)   # (heads*bblk, t, s)

    # Re-assemble head-major (rows, e) and run ONE unify matmul (K = e).
    o_cat = jnp.concatenate(
        [oh[h * bblk:(h + 1) * bblk].reshape(rows, s) for h in range(heads)],
        axis=-1)                                          # (rows, e)
    y = jnp.dot(o_cat, wu_t_ref[...], preferred_element_type=jnp.float32)
    y = y + bu_ref[...].astype(jnp.float32)               # (1, e) broadcast

    o_ref[...] = y.reshape(o_ref.shape).astype(o_ref.dtype)


def self_attention_narrow(x, wq, wk, wv, wu, bu, *, heads: int):
    """x: (B, T, E).  wq/wk/wv: (s, s) PyTorch layout (out, in).  wu: (E, E), bu: (E,)."""
    b, t, e = x.shape
    assert e % heads == 0
    dt = x.dtype
    itemsize = jnp.dtype(dt).itemsize

    # ---- host-side weight prep (cheap, outside the kernel) -----------------
    # Fold the combined q*k scale (e**-0.25 each side -> e**-0.5) into Wq, and
    # fuse the three block-diagonal per-head projections into ONE (e, 3*seg)
    # weight with lane-aligned segments.
    scale = 1.0 / math.sqrt(float(e))
    eye = jnp.eye(heads, dtype=jnp.float32)
    wq_bd = jnp.kron(eye, wq.T.astype(jnp.float32) * scale)     # (e, e)
    wk_bd = jnp.kron(eye, wk.T.astype(jnp.float32))
    wv_bd = jnp.kron(eye, wv.T.astype(jnp.float32))
    seg = e if e % 128 == 0 else _round_up(e, 128)
    w_qkv = (jnp.zeros((e, 3 * seg), jnp.float32)
             .at[:, 0:e].set(wq_bd)
             .at[:, seg:seg + e].set(wk_bd)
             .at[:, 2 * seg:2 * seg + e].set(wv_bd)).astype(dt)

    wu_t = wu.T.astype(dt)                                      # (e, e)
    bu_p = bu.reshape(1, e).astype(dt)                          # (1, e)

    # ---- batch blocking: VMEM- and MXU-aware -------------------------------
    vmem_cap, multi_tc = _tpu_caps()
    # Rough per-batch-row VMEM bytes: double-buffered x/out blocks + f32
    # intermediates (qkv, per-head q/k/v, scores+probs, pv out, unify result).
    per_row = 2 * t * e * itemsize + 2 * t * e * itemsize
    per_row += 4 * (3 * seg * t + 3 * e * t + 2 * heads * t * t + 2 * e * t)
    weight_bytes = 2 * (e * 3 * seg + e * e + e) * itemsize
    budget = max(1 << 20, int(vmem_cap * 0.5) - weight_bytes)
    bblk_vmem = max(1, budget // per_row)
    bblk_mxu = max(1, 512 // max(1, t))            # ~512 rows per fused matmul
    bblk = int(min(b, bblk_mxu, bblk_vmem))
    if multi_tc and b >= 2:
        bblk = min(bblk, -(-b // 2))               # >=2 steps so both TCs get work
    if bblk < b:                                   # align bblk*t to the MXU M dim
        align = max(1, 256 // math.gcd(256, t))
        if bblk >= align:
            bblk = (bblk // align) * align
    bblk = max(1, bblk)
    n_blocks = -(-b // bblk)
    b_pad = n_blocks * bblk
    x_in = x if b_pad == b else jnp.pad(x, ((0, b_pad - b), (0, 0), (0, 0)))

    vmem_limit = int(max(32 << 20, int(vmem_cap * 0.8)))

    kernel = functools.partial(_self_attn_kernel, heads=heads, emb=e, seg=seg)

    out = pl.pallas_call(
        kernel,
        out_shape=jax.ShapeDtypeStruct((b_pad, t, e), dt),
        grid_spec=pltpu.PrefetchScalarGridSpec(
            num_scalar_prefetch=0,
            grid=(n_blocks,),
            in_specs=[
                pl.BlockSpec((bblk, t, e), lambda i: (i, 0, 0)),   # x
                pl.BlockSpec((e, 3 * seg), lambda i: (0, 0)),      # fused Wq|Wk|Wv (block-diag)
                pl.BlockSpec((e, e), lambda i: (0, 0)),            # Wu^T
                pl.BlockSpec((1, e), lambda i: (0, 0)),            # bu
            ],
            out_specs=pl.BlockSpec((bblk, t, e), lambda i: (i, 0, 0)),
        ),
        compiler_params=pltpu.CompilerParams(
            dimension_semantics=("parallel",),
            vmem_limit_bytes=vmem_limit),
    )(x_in, w_qkv, wu_t, bu_p)

    return out if b_pad == b else out[:b]


def _reference(x, wq, wk, wv, wu, bu, *, heads: int):
    """Pure-JAX replica of the PyTorch forward for verification."""
    b, t, e = x.shape
    s = e // heads
    xh = x.reshape(b, t, heads, s)
    keys = jnp.einsum('bths,os->btho', xh, wk)
    queries = jnp.einsum('bths,os->btho', xh, wq)
    values = jnp.einsum('bths,os->btho', xh, wv)
    keys = jnp.transpose(keys, (0, 2, 1, 3)).reshape(b * heads, t, s)
    queries = jnp.transpose(queries, (0, 2, 1, 3)).reshape(b * heads, t, s)
    values = jnp.transpose(values, (0, 2, 1, 3)).reshape(b * heads, t, s)
    scale = e ** 0.25
    queries = queries / scale
    keys = keys / scale
    dot = jnp.einsum('nqs,nks->nqk', queries, keys)
    dot = jax.nn.softmax(dot, axis=2)
    out = jnp.einsum('nqk,nks->nqs', dot, values).reshape(b, heads, t, s)
    out = jnp.transpose(out, (0, 2, 1, 3)).reshape(b, t, heads * s)
    return jnp.einsum('bte,oe->bto', out, wu) + bu


if __name__ == "__main__":
    # Small shapes consistent with the module: batch=2, seq=8, emb=32, heads=4 (s=8).
    B, T, E, H = 2, 8, 32, 4
    S = E // H

    key = jax.random.PRNGKey(0)
    kx, kq, kk, kv, ku, kb = jax.random.split(key, 6)

    x = jax.random.normal(kx, (B, T, E), dtype=jnp.float32)
    bound_s = 1.0 / (S ** 0.5)
    bound_e = 1.0 / (E ** 0.5)
    wq = jax.random.uniform(kq, (S, S), jnp.float32, -bound_s, bound_s)
    wk = jax.random.uniform(kk, (S, S), jnp.float32, -bound_s, bound_s)
    wv = jax.random.uniform(kv, (S, S), jnp.float32, -bound_s, bound_s)
    wu = jax.random.uniform(ku, (E, E), jnp.float32, -bound_e, bound_e)
    bu = jax.random.uniform(kb, (E,), jnp.float32, -bound_e, bound_e)

    out = self_attention_narrow(x, wq, wk, wv, wu, bu, heads=H)
    out = jax.block_until_ready(out)

    ref = _reference(x, wq, wk, wv, wu, bu, heads=H)
    assert out.shape == (B, T, E)
    # Tolerance covers MXU f32 matmul rounding; softmax normalization is exact.
    assert jnp.allclose(out, ref, atol=2e-3, rtol=2e-3), "mismatch vs reference"

    print("KERNEL_OK")
</pallas_src>

<mosaic_0001>
module attributes {stable_mosaic.version = 11 : i64} {
  func.func @_self_attn_kernel(%arg0: i32, %arg1: memref<2x8x32xf32, #tpu.memory_space<vmem>>, %arg2: memref<32x384xf32, #tpu.memory_space<vmem>>, %arg3: memref<32x32xf32, #tpu.memory_space<vmem>>, %arg4: memref<1x32xf32, #tpu.memory_space<vmem>>, %arg5: memref<2x8x32xf32, #tpu.memory_space<vmem>>) attributes {dimension_semantics = [#tpu.dimension_semantics<parallel>], iteration_bounds = array<i64: 1>, scalar_prefetch = 0 : i64, scratch_operands = 0 : i64, tpu.core_type = #tpu.core_type<tc>, window_params = [{transform_indices = @transform_0, window_bounds = array<i64: 2, 8, 32>}, {pipeline_mode = #tpu.pipeline_mode<synchronous>, transform_indices = @transform_1, window_bounds = array<i64: 32, 384>}, {pipeline_mode = #tpu.pipeline_mode<synchronous>, transform_indices = @transform_2, window_bounds = array<i64: 32, 32>}, {pipeline_mode = #tpu.pipeline_mode<synchronous>, transform_indices = @transform_3, window_bounds = array<i64: 1, 32>}, {transform_indices = @transform_4, window_bounds = array<i64: 2, 8, 32>}]} {
    %c0 = arith.constant 0 : index
    %c0_0 = arith.constant 0 : index
    %c0_1 = arith.constant 0 : index
    %0 = vector.load %arg1[%c0, %c0_0, %c0_1] : memref<2x8x32xf32, #tpu.memory_space<vmem>>, vector<2x8x32xf32>
    %1 = vector.shape_cast %0 : vector<2x8x32xf32> to vector<16x32xf32>
    %c0_2 = arith.constant 0 : index
    %c0_3 = arith.constant 0 : index
    %2 = vector.load %arg2[%c0_2, %c0_3] : memref<32x384xf32, #tpu.memory_space<vmem>>, vector<32x384xf32>
    %cst = arith.constant dense<0.000000e+00> : vector<16x384xf32>
    %3 = tpu.matmul %1, %2, %cst {dimension_numbers = #tpu.dot_dimension_numbers<[1], [0], [0], [1], [0, 0, 1, 1], [], []>} : vector<16x32xf32>, vector<32x384xf32>, vector<16x384xf32> -> vector<16x384xf32>
    %4 = vector.extract_strided_slice %3 {offsets = [0, 0], sizes = [16, 8], strides = [1, 1]} : vector<16x384xf32> to vector<16x8xf32>
    %5 = vector.shape_cast %4 : vector<16x8xf32> to vector<2x8x8xf32>
    %6 = vector.extract_strided_slice %3 {offsets = [0, 8], sizes = [16, 8], strides = [1, 1]} : vector<16x384xf32> to vector<16x8xf32>
    %7 = vector.shape_cast %6 : vector<16x8xf32> to vector<2x8x8xf32>
    %8 = vector.extract_strided_slice %3 {offsets = [0, 16], sizes = [16, 8], strides = [1, 1]} : vector<16x384xf32> to vector<16x8xf32>
    %9 = vector.shape_cast %8 : vector<16x8xf32> to vector<2x8x8xf32>
    %10 = vector.extract_strided_slice %3 {offsets = [0, 24], sizes = [16, 8], strides = [1, 1]} : vector<16x384xf32> to vector<16x8xf32>
    %11 = vector.shape_cast %10 : vector<16x8xf32> to vector<2x8x8xf32>
    %12 = tpu.concatenate %5, %7, %9, %11 in 0 : vector<2x8x8xf32>, vector<2x8x8xf32>, vector<2x8x8xf32>, vector<2x8x8xf32> -> vector<8x8x8xf32>
    %13 = vector.extract_strided_slice %3 {offsets = [0, 128], sizes = [16, 8], strides = [1, 1]} : vector<16x384xf32> to vector<16x8xf32>
    %14 = vector.shape_cast %13 : vector<16x8xf32> to vector<2x8x8xf32>
    %15 = vector.extract_strided_slice %3 {offsets = [0, 136], sizes = [16, 8], strides = [1, 1]} : vector<16x384xf32> to vector<16x8xf32>
    %16 = vector.shape_cast %15 : vector<16x8xf32> to vector<2x8x8xf32>
    %17 = vector.extract_strided_slice %3 {offsets = [0, 144], sizes = [16, 8], strides = [1, 1]} : vector<16x384xf32> to vector<16x8xf32>
    %18 = vector.shape_cast %17 : vector<16x8xf32> to vector<2x8x8xf32>
    %19 = vector.extract_strided_slice %3 {offsets = [0, 152], sizes = [16, 8], strides = [1, 1]} : vector<16x384xf32> to vector<16x8xf32>
    %20 = vector.shape_cast %19 : vector<16x8xf32> to vector<2x8x8xf32>
    %21 = tpu.concatenate %14, %16, %18, %20 in 0 : vector<2x8x8xf32>, vector<2x8x8xf32>, vector<2x8x8xf32>, vector<2x8x8xf32> -> vector<8x8x8xf32>
    %22 = vector.extract_strided_slice %3 {offsets = [0, 256], sizes = [16, 8], strides = [1, 1]} : vector<16x384xf32> to vector<16x8xf32>
    %23 = vector.shape_cast %22 : vector<16x8xf32> to vector<2x8x8xf32>
    %24 = vector.extract_strided_slice %3 {offsets = [0, 264], sizes = [16, 8], strides = [1, 1]} : vector<16x384xf32> to vector<16x8xf32>
    %25 = vector.shape_cast %24 : vector<16x8xf32> to vector<2x8x8xf32>
    %26 = vector.extract_strided_slice %3 {offsets = [0, 272], sizes = [16, 8], strides = [1, 1]} : vector<16x384xf32> to vector<16x8xf32>
    %27 = vector.shape_cast %26 : vector<16x8xf32> to vector<2x8x8xf32>
    %28 = vector.extract_strided_slice %3 {offsets = [0, 280], sizes = [16, 8], strides = [1, 1]} : vector<16x384xf32> to vector<16x8xf32>
    %29 = vector.shape_cast %28 : vector<16x8xf32> to vector<2x8x8xf32>
    %30 = tpu.concatenate %23, %25, %27, %29 in 0 : vector<2x8x8xf32>, vector<2x8x8xf32>, vector<2x8x8xf32>, vector<2x8x8xf32> -> vector<8x8x8xf32>
    %cst_4 = arith.constant dense<0.000000e+00> : vector<8x8x8xf32>
    %31 = tpu.matmul %12, %21, %cst_4 {dimension_numbers = #tpu.dot_dimension_numbers<[2], [2], [1], [1], [0, 0, 0, 1, 1, 1], [0], [0]>} : vector<8x8x8xf32>, vector<8x8x8xf32>, vector<8x8x8xf32> -> vector<8x8x8xf32>
    %cst_5 = arith.constant dense<0xFF800000> : vector<8x8xf32>
    %32 = vector.multi_reduction <maximumf>, %31, %cst_5 [2] : vector<8x8x8xf32> to vector<8x8xf32>
    %33 = vector.shape_cast %32 : vector<8x8xf32> to vector<8x8x1xf32>
    %34 = vector.broadcast %33 : vector<8x8x1xf32> to vector<8x8x8xf32>
    %35 = arith.subf %31, %34 : vector<8x8x8xf32>
    %36 = math.exp %35 : vector<8x8x8xf32>
    %cst_6 = arith.constant dense<0.000000e+00> : vector<8x8xf32>
    %37 = vector.multi_reduction <add>, %36, %cst_6 [2] : vector<8x8x8xf32> to vector<8x8xf32>
    %38 = vector.shape_cast %37 : vector<8x8xf32> to vector<8x8x1xf32>
    %39 = tpu.reciprocal %38 : vector<8x8x1xf32> -> vector<8x8x1xf32>
    %40 = vector.broadcast %39 : vector<8x8x1xf32> to vector<8x8x8xf32>
    %41 = arith.mulf %36, %40 : vector<8x8x8xf32>
    %cst_7 = arith.constant dense<0.000000e+00> : vector<8x8x8xf32>
    %42 = tpu.matmul %41, %30, %cst_7 {dimension_numbers = #tpu.dot_dimension_numbers<[2], [1], [1], [2], [0, 0, 0, 1, 1, 2], [0], [0]>} : vector<8x8x8xf32>, vector<8x8x8xf32>, vector<8x8x8xf32> -> vector<8x8x8xf32>
    %43 = vector.extract_strided_slice %42 {offsets = [0, 0, 0], sizes = [2, 8, 8], strides = [1, 1, 1]} : vector<8x8x8xf32> to vector<2x8x8xf32>
    %44 = vector.shape_cast %43 : vector<2x8x8xf32> to vector<16x8xf32>
    %45 = vector.extract_strided_slice %42 {offsets = [2, 0, 0], sizes = [2, 8, 8], strides = [1, 1, 1]} : vector<8x8x8xf32> to vector<2x8x8xf32>
    %46 = vector.shape_cast %45 : vector<2x8x8xf32> to vector<16x8xf32>
    %47 = vector.extract_strided_slice %42 {offsets = [4, 0, 0], sizes = [2, 8, 8], strides = [1, 1, 1]} : vector<8x8x8xf32> to vector<2x8x8xf32>
    %48 = vector.shape_cast %47 : vector<2x8x8xf32> to vector<16x8xf32>
    %49 = vector.extract_strided_slice %42 {offsets = [6, 0, 0], sizes = [2, 8, 8], strides = [1, 1, 1]} : vector<8x8x8xf32> to vector<2x8x8xf32>
    %50 = vector.shape_cast %49 : vector<2x8x8xf32> to vector<16x8xf32>
    %51 = tpu.concatenate %44, %46, %48, %50 in 1 : vector<16x8xf32>, vector<16x8xf32>, vector<16x8xf32>, vector<16x8xf32> -> vector<16x32xf32>
    %c0_8 = arith.constant 0 : index
    %c0_9 = arith.constant 0 : index
    %52 = vector.load %arg3[%c0_8, %c0_9] : memref<32x32xf32, #tpu.memory_space<vmem>>, vector<32x32xf32>
    %cst_10 = arith.constant dense<0.000000e+00> : vector<16x32xf32>
    %53 = tpu.matmul %51, %52, %cst_10 {dimension_numbers = #tpu.dot_dimension_numbers<[1], [0], [0], [1], [0, 0, 1, 1], [], []>} : vector<16x32xf32>, vector<32x32xf32>, vector<16x32xf32> -> vector<16x32xf32>
    %c0_11 = arith.constant 0 : index
    %c0_12 = arith.constant 0 : index
    %54 = vector.load %arg4[%c0_11, %c0_12] : memref<1x32xf32, #tpu.memory_space<vmem>>, vector<1x32xf32>
    %55 = vector.broadcast %54 : vector<1x32xf32> to vector<16x32xf32>
    %56 = arith.addf %53, %55 : vector<16x32xf32>
    %57 = vector.shape_cast %56 : vector<16x32xf32> to vector<2x8x32xf32>
    %c0_13 = arith.constant 0 : index
    %c0_14 = arith.constant 0 : index
    %c0_15 = arith.constant 0 : index
    %58 = vector.load %arg5[%c0_13, %c0_14, %c0_15] : memref<2x8x32xf32, #tpu.memory_space<vmem>>, vector<2x8x32xf32>
    tpu.vector_store %arg5[%c0_13, %c0_14, %c0_15], %57 {strides = array<i32>} : memref<2x8x32xf32, #tpu.memory_space<vmem>>, vector<2x8x32xf32>,
    return
  }
  func.func @transform_0(%arg0: i32) -> (i32, i32, i32) {
    %c0_i32 = arith.constant 0 : i32
    %c0_i32_0 = arith.constant 0 : i32
    %c0_i32_1 = arith.constant 0 : i32
    return %arg0, %c0_i32, %c0_i32_0 : i32, i32, i32
  }
  func.func @transform_1(%arg0: i32) -> (i32, i32) {
    %c0_i32 = arith.constant 0 : i32
    %c0_i32_0 = arith.constant 0 : i32
    %c0_i32_1 = arith.constant 0 : i32
    return %c0_i32, %c0_i32_0 : i32, i32
  }
  func.func @transform_2(%arg0: i32) -> (i32, i32) {
    %c0_i32 = arith.constant 0 : i32
    %c0_i32_0 = arith.constant 0 : i32
    %c0_i32_1 = arith.constant 0 : i32
    return %c0_i32, %c0_i32_0 : i32, i32
  }
  func.func @transform_3(%arg0: i32) -> (i32, i32) {
    %c0_i32 = arith.constant 0 : i32
    %c0_i32_0 = arith.constant 0 : i32
    %c0_i32_1 = arith.constant 0 : i32
    return %c0_i32, %c0_i32_0 : i32, i32
  }
  func.func @transform_4(%arg0: i32) -> (i32, i32, i32) {
    %c0_i32 = arith.constant 0 : i32
    %c0_i32_0 = arith.constant 0 : i32
    %c0_i32_1 = arith.constant 0 : i32
    return %arg0, %c0_i32, %c0_i32_0 : i32, i32, i32
  }
}

</mosaic_0001>

<llo_original>
// kernel: tpu_custom_call.1
$region0: #{tpu_custom_call.1}
  #allocation0 [shape = 'u32[]', space=smem, size = 0x4, offset = 0x4, fixed_abs, tag = 'smem constant byte address 0x4 - core index']
  #allocation1 [shape = 'u32[144,128]{1,0:T(1,128)}', space=vmem, size = 0x12000, scoped, tag = 'internal scratch']
  %s0 = inlined_call_operand.hbm [shape: f32[2,8,32], index: 0, kind: input, shape index: {}]
  %s1 = inlined_call_operand.hbm [shape: f32[32,384], index: 1, kind: input, shape index: {}]
  %s2 = inlined_call_operand.hbm [shape: f32[32,32], index: 2, kind: input, shape index: {}]
  %s3 = inlined_call_operand.vmem [shape: f32[1,32], index: 3, kind: input, shape index: {}]
  %s4 = inlined_call_operand.hbm [shape: f32[2,8,32], index: 4, kind: output, shape index: {}]
  %s5 = sld [smem:[#allocation0]]
  $region38: #{tpu_custom_call.1} parent=0
    _
  %s7 = ssub.s32 1, %s5
  %s8 = scalar_select 0, %s7, %s5
  $region1: #{tpu_custom_call.1} parent=0
    #allocation2 [shape = 'u8[8192]{0}', space=vmem, size = 0x2000, scoped, tag = 'input window, operand 0, single buffered']
    #allocation3 [shape = 's32[1]{0}', space=sflag, size = 0x4, scoped, tag = 'scoped memory for tpu_custom_call.1']
    #allocation4 [shape = 's32[1]{0}', space=sflag, size = 0x4, scoped, tag = 'scoped memory for tpu_custom_call.1']
    #allocation5 [shape = 'u8[49152]{0}', space=vmem, size = 0xc000, scoped, tag = 'input window, operand 1, single buffered']
    #allocation6 [shape = 's32[1]{0}', space=sflag, size = 0x4, scoped, tag = 'scoped memory for tpu_custom_call.1']
    #allocation7 [shape = 'u8[16384]{0}', space=vmem, size = 0x4000, scoped, tag = 'input window, operand 2, single buffered']
    #allocation8 [shape = 'u8[8192]{0}', space=vmem, size = 0x2000, scoped, tag = 'output window, operand 0, single buffered']
    %9 = vsyncpa [#allocation3], 0
    %10 = vsyncpa [#allocation6], 0
    %11 = vsyncpa [#allocation4], 0
    // Predicated region
    $region2: #{tpu_custom_call.1} parent=1 // pred_check
      _
    $region3: #{tpu_custom_call.1} parent=1 // pred_check_branch
      %13 = sbr.rel (0) target = $region5
    $region4: #{tpu_custom_call.1} parent=1 // pred_region
      %s15 = ssub.s32 256, 256
      %16 = vsyncadd [#allocation3], %s15
      %s17 = sshll.u32 [#allocation2], 4
      %s18 = int_to_ptr.vmem [resolvable:$true] %s17
      %23 = dma.hbm_to_vmem [thread:$0]  %s0, 256, %s18, [#allocation3], 128, 128, 8
    $region5: #{tpu_custom_call.1} parent=1 // pred_fallthru
      _
    // Predicated region
    $region6: #{tpu_custom_call.1} parent=1 // pred_check
      _
    $region7: #{tpu_custom_call.1} parent=1 // pred_check_branch
      %25 = sbr.rel (0) target = $region9
    $region8: #{tpu_custom_call.1} parent=1 // pred_region
      %s27 = ssub.s32 1536, 1536
      %28 = vsyncadd [#allocation6], %s27
      %s29 = sshll.u32 [#allocation5], 4
      %s30 = int_to_ptr.vmem [resolvable:$true] %s29
      %35 = dma.hbm_to_vmem [thread:$0]  %s1, 1536, %s30, [#allocation6], 384, 384, 24
    $region9: #{tpu_custom_call.1} parent=1 // pred_fallthru
      _
    // Predicated region
    $region10: #{tpu_custom_call.1} parent=1 // pred_check
      _
    $region11: #{tpu_custom_call.1} parent=1 // pred_check_branch
      %37 = sbr.rel (0) target = $region13
    $region12: #{tpu_custom_call.1} parent=1 // pred_region
      %s39 = ssub.s32 512, 512
      %40 = vsyncadd [#allocation6], %s39
      %s41 = sshll.u32 [#allocation7], 4
      %s42 = int_to_ptr.vmem [resolvable:$true] %s41
      %47 = dma.hbm_to_vmem [thread:$0]  %s2, 512, %s42, [#allocation6], 128, 128, 8
    $region13: #{tpu_custom_call.1} parent=1 // pred_fallthru
      _
    // Predicated region
    $region14: #{tpu_custom_call.1} parent=1 // pred_check
      _
    $region15: #{tpu_custom_call.1} parent=1 // pred_check_branch
      %49 = sbr.rel (0) target = $region17
    $region16: #{tpu_custom_call.1} parent=1 // pred_region
      _
    $region17: #{tpu_custom_call.1} parent=1 // pred_fallthru
      _
    // Predicated region
    $region18: #{tpu_custom_call.1} parent=1 // pred_check
      _
    $region19: #{tpu_custom_call.1} parent=1 // pred_check_branch
      %51 = sbr.rel (0) target = $region21
    $region20: #{tpu_custom_call.1} parent=1 // pred_region
      %52 = dma.done [#allocation3], 256
    $region21: #{tpu_custom_call.1} parent=1 // pred_fallthru
      _
    // Predicated region
    $region22: #{tpu_custom_call.1} parent=1 // pred_check
      _
    $region23: #{tpu_custom_call.1} parent=1 // pred_check_branch
      %54 = sbr.rel (0) target = $region25
    $region24: #{tpu_custom_call.1} parent=1 // pred_region
      %55 = dma.done [#allocation6], 1536
    $region25: #{tpu_custom_call.1} parent=1 // pred_fallthru
      _
    // Predicated region
    $region26: #{tpu_custom_call.1} parent=1 // pred_check
      _
    $region27: #{tpu_custom_call.1} parent=1 // pred_check_branch
      %57 = sbr.rel (0) target = $region29
    $region28: #{tpu_custom_call.1} parent=1 // pred_region
      %58 = dma.done [#allocation6], 512
    $region29: #{tpu_custom_call.1} parent=1 // pred_fallthru
      _
    %v59 = vld [vmem:[#allocation2] sm:$0xff]
    %v60 = vld [vmem:[#allocation2 + $0x8] sm:$0xff]
    %v61 = vld [vmem:[#allocation5] sm:$0xff]
    %v62 = vld [vmem:[#allocation5 + $0x8] sm:$0xff]
    %v63 = vld [vmem:[#allocation5 + $0x10] sm:$0xff]
    %v64 = vld [vmem:[#allocation5 + $0x18] sm:$0xff]
    %v65 = vld [vmem:[#allocation5 + $0x20] sm:$0xff]
    %v66 = vld [vmem:[#allocation5 + $0x28] sm:$0xff]
    %v67 = vld [vmem:[#allocation5 + $0x30] sm:$0xff]
    %v68 = vld [vmem:[#allocation5 + $0x38] sm:$0xff]
    %v69 = vld [vmem:[#allocation5 + $0x40] sm:$0xff]
    %v70 = vld [vmem:[#allocation5 + $0x48] sm:$0xff]
    %v71 = vld [vmem:[#allocation5 + $0x50] sm:$0xff]
    %v72 = vld [vmem:[#allocation5 + $0x58] sm:$0xff]
    %vm73 = vcmask 261120
    %v75 = vsel %vm73, %v59, 0
    %v78 = vsel %vm73, %v60, 0
    %80 = vmatprep.subr.mxu0 %v62
    %81 = vmatpush1.msra.mxu0 %v61
    %82 = vmatprep.subr.mxu0 %v65
    %83 = vmatpush1.msra.mxu0 %v64
    %84 = vmatprep.subr.mxu0 %v68
    %85 = vmatpush1.msra.mxu0 %v67
    %86 = vmatprep.subr.mxu0 %v71
    %87 = vmatpush1.msra.mxu0 %v70
    %88 = vmatprep.subr.mxu0 0.0
    %89 = vmatpush1.msra.mxu0 0.0
    %90 = vmatprep.subr.mxu0 0.0
    %91 = vmatpush1.msra.mxu0 0.0
    %92 = vmatprep.subr.mxu0 0.0
    %93 = vmatpush1.msra.mxu0 0.0
    %94 = vmatprep.subr.mxu0 0.0
    %95 = vmatpush1.msra.mxu0 0.0
    %96 = vmatprep.subr.mxu0 0.0
    %97 = vmatpush1.msra.mxu0 0.0
    %98 = vmatprep.subr.mxu0 0.0
    %99 = vmatpush1.msra.mxu0 0.0
    %100 = vmatprep.subr.mxu0 0.0
    %101 = vmatpush1.msra.mxu0 0.0
    %102 = vmatprep.subr.mxu0 0.0
    %103 = vmatpush1.msra.mxu0 0.0
    %104 = vmatprep.subr.mxu0 0.0
    %105 = vmatpush1.msra.mxu0 0.0
    %106 = vmatprep.subr.mxu0 0.0
    %107 = vmatpush1.msra.mxu0 0.0
    %108 = vmatprep.subr.mxu0 0.0
    %109 = vmatpush1.msra.mxu0 0.0
    %110 = vmatprep.subr.mxu0 0.0
    %111 = vmatpush1.msra.mxu0 0.0
    %112 = vmatprep.subr.mxu0 0.0
    %113 = vmatpush1.msra.mxu0 0.0
    %114 = vmatprep.subr.mxu0 0.0
    %115 = vmatpush1.msra.mxu0 0.0
    %116 = vmatprep.subr.mxu0 0.0
    %117 = vmatpush1.msra.mxu0 0.0
    %118 = vmatprep.subr.mxu0 0.0
    %119 = vmatpush1.msra.mxu0 0.0
    %120 = vmatprep.subr.mxu0 0.0
    %121 = vmatpush1.msra.mxu0 0.0
    %122 = vmatprep.subr.mxu0 0.0
    %123 = vmatpush1.msra.mxu0 0.0
    %124 = vmatprep.subr.mxu0 0.0
    %125 = vmatpush1.msra.mxu0 0.0
    %126 = vmatprep.subr.mxu0 0.0
    %127 = vmatpush1.msra.mxu0 0.0
    %128 = vmatprep.subr.mxu0 0.0
    %129 = vmatpush1.msra.mxu0 0.0
    %130 = vmatprep.subr.mxu0 0.0
    %131 = vmatpush1.msra.mxu0 0.0
    %132 = vmatprep.subr.mxu0 0.0
    %133 = vmatpush1.msra.mxu0 0.0
    %134 = vmatprep.subr.mxu0 0.0
    %135 = vmatpush1.msra.mxu0 0.0
    %136 = vmatprep.subr.mxu0 0.0
    %137 = vmatpush1.msra.mxu0 0.0
    %138 = vmatprep.subr.mxu0 0.0
    %139 = vmatpush1.msra.mxu0 0.0
    %140 = vmatprep.subr.mxu0 0.0
    %141 = vmatpush1.msra.mxu0 0.0
    %142 = vmatprep.subr.mxu0 0.0
    %143 = vmatpush1.msra.mxu0 0.0
    %144 = vmatprep.mubr.f32.mxu0 0.0
    %145 = vmatmul.mubr.f32.gmra.mrb[0].mxu0 %v75
    %v146 = vpop.f32.mrb[0].mxu0
    %v147 = vadd.f32 0.0, %v146
    %v148 = vpop.f32.mrb[0].mxu0
    %v149 = vadd.f32 0.0, %v148
    %150 = vmatprep.mubr.f32.mxu0 0.0
    %151 = vmatmul.mubr.f32.gmra.mrb[0].mxu0 %v78
    %v152 = vpop.f32.mrb[0].mxu0
    %v153 = vadd.f32 0.0, %v152
    %v154 = vpop.f32.mrb[0].mxu0
    %v155 = vadd.f32 0.0, %v154
    %156 = vdwg.mxu0
    %157 = vmatprep.subr.mxu0 0.0
    %158 = vmatpush1.msra.mxu0 %v63
    %159 = vmatprep.subr.mxu0 0.0
    %160 = vmatpush1.msra.mxu0 %v66
    %161 = vmatprep.subr.mxu0 0.0
    %162 = vmatpush1.msra.mxu0 %v69
    %163 = vmatprep.subr.mxu0 0.0
    %164 = vmatpush1.msra.mxu0 %v72
    %165 = vmatprep.subr.mxu0 0.0
    %166 = vmatpush1.msra.mxu0 0.0
    %167 = vmatprep.subr.mxu0 0.0
    %168 = vmatpush1.msra.mxu0 0.0
    %169 = vmatprep.subr.mxu0 0.0
    %170 = vmatpush1.msra.mxu0 0.0
    %171 = vmatprep.subr.mxu0 0.0
    %172 = vmatpush1.msra.mxu0 0.0
    %173 = vmatprep.subr.mxu0 0.0
    %174 = vmatpush1.msra.mxu0 0.0
    %175 = vmatprep.subr.mxu0 0.0
    %176 = vmatpush1.msra.mxu0 0.0
    %177 = vmatprep.subr.mxu0 0.0
    %178 = vmatpush1.msra.mxu0 0.0
    %179 = vmatprep.subr.mxu0 0.0
    %180 = vmatpush1.msra.mxu0 0.0
    %181 = vmatprep.subr.mxu0 0.0
    %182 = vmatpush1.msra.mxu0 0.0
    %183 = vmatprep.subr.mxu0 0.0
    %184 = vmatpush1.msra.mxu0 0.0
    %185 = vmatprep.subr.mxu0 0.0
    %186 = vmatpush1.msra.mxu0 0.0
    %187 = vmatprep.subr.mxu0 0.0
    %188 = vmatpush1.msra.mxu0 0.0
    %189 = vmatprep.subr.mxu0 0.0
    %190 = vmatpush1.msra.mxu0 0.0
    %191 = vmatprep.subr.mxu0 0.0
    %192 = vmatpush1.msra.mxu0 0.0
    %193 = vmatprep.subr.mxu0 0.0
    %194 = vmatpush1.msra.mxu0 0.0
    %195 = vmatprep.subr.mxu0 0.0
    %196 = vmatpush1.msra.mxu0 0.0
    %197 = vmatprep.subr.mxu0 0.0
    %198 = vmatpush1.msra.mxu0 0.0
    %199 = vmatprep.subr.mxu0 0.0
    %200 = vmatpush1.msra.mxu0 0.0
    %201 = vmatprep.subr.mxu0 0.0
    %202 = vmatpush1.msra.mxu0 0.0
    %203 = vmatprep.subr.mxu0 0.0
    %204 = vmatpush1.msra.mxu0 0.0
    %205 = vmatprep.subr.mxu0 0.0
    %206 = vmatpush1.msra.mxu0 0.0
    %207 = vmatprep.subr.mxu0 0.0
    %208 = vmatpush1.msra.mxu0 0.0
    %209 = vmatprep.subr.mxu0 0.0
    %210 = vmatpush1.msra.mxu0 0.0
    %211 = vmatprep.subr.mxu0 0.0
    %212 = vmatpush1.msra.mxu0 0.0
    %213 = vmatprep.subr.mxu0 0.0
    %214 = vmatpush1.msra.mxu0 0.0
    %215 = vmatprep.subr.mxu0 0.0
    %216 = vmatpush1.msra.mxu0 0.0
    %217 = vmatprep.subr.mxu0 0.0
    %218 = vmatpush1.msra.mxu0 0.0
    %219 = vmatprep.subr.mxu0 0.0
    %220 = vmatpush1.msra.mxu0 0.0
    %221 = vmatprep.mubr.f32.mxu0 0.0
    %222 = vmatmul.mubr.f32.gmra.mrb[0].mxu0 %v75
    %v223 = vpop.f32.mrb[0].mxu0
    %v224 = vadd.f32 0.0, %v223
    %v225 = vpop.f32.mrb[0].mxu0
    %226 = vmatprep.mubr.f32.mxu0 0.0
    %227 = vmatmul.mubr.f32.gmra.mrb[0].mxu0 %v78
    %v228 = vpop.f32.mrb[0].mxu0
    %v229 = vadd.f32 0.0, %v228
    %v230 = vpop.f32.mrb[0].mxu0
    %231 = vdwg.mxu0
    %234 = vrot.lane.b32.xlu0 %v147, 120
    %v235 = vpop.permute.xlu0 %234
    %236 = vrot.lane.b32.xlu0 %v153, 120
    %v237 = vpop.permute.xlu0 %236
    %238 = vrot.lane.b32.xlu0 %v147, 112
    %v239 = vpop.permute.xlu0 %238
    %240 = vrot.lane.b32.xlu0 %v153, 112
    %v241 = vpop.permute.xlu0 %240
    %242 = vrot.lane.b32.xlu0 %v147, 104
    %v243 = vpop.permute.xlu0 %242
    %244 = vrot.lane.b32.xlu0 %v153, 104
    %v245 = vpop.permute.xlu0 %244
    %248 = vrot.lane.b32.xlu0 %v149, 120
    %v249 = vpop.permute.xlu0 %248
    %250 = vrot.lane.b32.xlu0 %v155, 120
    %v251 = vpop.permute.xlu0 %250
    %252 = vrot.lane.b32.xlu0 %v149, 112
    %v253 = vpop.permute.xlu0 %252
    %254 = vrot.lane.b32.xlu0 %v155, 112
    %v255 = vpop.permute.xlu0 %254
    %256 = vrot.lane.b32.xlu0 %v149, 104
    %v257 = vpop.permute.xlu0 %256
    %258 = vrot.lane.b32.xlu0 %v155, 104
    %v259 = vpop.permute.xlu0 %258
    %262 = vrot.lane.b32.xlu0 %v224, 120
    %v263 = vpop.permute.xlu0 %262
    %264 = vrot.lane.b32.xlu0 %v229, 120
    %v265 = vpop.permute.xlu0 %264
    %268 = vrot.lane.b32.xlu0 %v224, 112
    %v269 = vpop.permute.xlu0 %268
    %270 = vrot.lane.b32.xlu0 %v229, 112
    %v271 = vpop.permute.xlu0 %270
    %274 = vrot.lane.b32.xlu0 %v224, 104
    %v275 = vpop.permute.xlu0 %274
    %276 = vrot.lane.b32.xlu0 %v229, 104
    %v277 = vpop.permute.xlu0 %276
    %vm280 = vcmask 64512
    %v281 = vsel %vm280, %v147, 0
    %v283 = vsel %vm280, %v149, 0
    %285 = vmatprep.subr.mxu0 0.0
    %286 = vmatpush1.xpose.msra.mxu0 %v283
    %287 = vmatprep.subr.mxu0 0.0
    %288 = vmatpush1.xpose.msra.mxu0 0.0
    %289 = vmatprep.subr.mxu0 0.0
    %290 = vmatpush1.xpose.msra.mxu0 0.0
    %291 = vmatprep.subr.mxu0 0.0
    %292 = vmatpush1.xpose.msra.mxu0 0.0
    %293 = vmatprep.subr.mxu0 0.0
    %294 = vmatpush1.xpose.msra.mxu0 0.0
    %295 = vmatprep.subr.mxu0 0.0
    %296 = vmatpush1.xpose.msra.mxu0 0.0
    %297 = vmatprep.subr.mxu0 0.0
    %298 = vmatpush1.xpose.msra.mxu0 0.0
    %299 = vmatprep.subr.mxu0 0.0
    %300 = vmatpush1.xpose.msra.mxu0 0.0
    %301 = vmatprep.subr.mxu0 0.0
    %302 = vmatpush1.xpose.msra.mxu0 0.0
    %303 = vmatprep.subr.mxu0 0.0
    %304 = vmatpush1.xpose.msra.mxu0 0.0
    %305 = vmatprep.subr.mxu0 0.0
    %306 = vmatpush1.xpose.msra.mxu0 0.0
    %307 = vmatprep.subr.mxu0 0.0
    %308 = vmatpush1.xpose.msra.mxu0 0.0
    %309 = vmatprep.subr.mxu0 0.0
    %310 = vmatpush1.xpose.msra.mxu0 0.0
    %311 = vmatprep.subr.mxu0 0.0
    %312 = vmatpush1.xpose.msra.mxu0 0.0
    %313 = vmatprep.subr.mxu0 0.0
    %314 = vmatpush1.xpose.msra.mxu0 0.0
    %315 = vmatprep.subr.mxu0 0.0
    %316 = vmatpush1.xpose.msra.mxu0 0.0
    %317 = vmatprep.subr.mxu0 0.0
    %318 = vmatpush1.xpose.msra.mxu0 0.0
    %319 = vmatprep.subr.mxu0 0.0
    %320 = vmatpush1.xpose.msra.mxu0 0.0
    %321 = vmatprep.subr.mxu0 0.0
    %322 = vmatpush1.xpose.msra.mxu0 0.0
    %323 = vmatprep.subr.mxu0 0.0
    %324 = vmatpush1.xpose.msra.mxu0 0.0
    %325 = vmatprep.subr.mxu0 0.0
    %326 = vmatpush1.xpose.msra.mxu0 0.0
    %327 = vmatprep.subr.mxu0 0.0
    %328 = vmatpush1.xpose.msra.mxu0 0.0
    %329 = vmatprep.subr.mxu0 0.0
    %330 = vmatpush1.xpose.msra.mxu0 0.0
    %331 = vmatprep.subr.mxu0 0.0
    %332 = vmatpush1.xpose.msra.mxu0 0.0
    %333 = vmatprep.subr.mxu0 0.0
    %334 = vmatpush1.xpose.msra.mxu0 0.0
    %335 = vmatprep.subr.mxu0 0.0
    %336 = vmatpush1.xpose.msra.mxu0 0.0
    %337 = vmatprep.subr.mxu0 0.0
    %338 = vmatpush1.xpose.msra.mxu0 0.0
    %339 = vmatprep.subr.mxu0 0.0
    %340 = vmatpush1.xpose.msra.mxu0 0.0
    %341 = vmatprep.subr.mxu0 0.0
    %342 = vmatpush1.xpose.msra.mxu0 0.0
    %343 = vmatprep.subr.mxu0 0.0
    %344 = vmatpush1.xpose.msra.mxu0 0.0
    %345 = vmatprep.subr.mxu0 0.0
    %346 = vmatpush1.xpose.msra.mxu0 0.0
    %347 = vmatprep.subr.mxu0 0.0
    %348 = vmatpush1.xpose.msra.mxu0 0.0
    %349 = vmatprep.mubr.f32.mxu0 0.0
    %350 = vmatmul.mubr.f32.gmra.mrb[0].mxu0 %v281
    %v351 = vpop.f32.mrb[0].mxu0
    %v352 = vadd.f32 0.0, %v351
    %v353 = vpop.f32.mrb[0].mxu0
    %354 = vdwg.mxu0
    %v355 = vsel %vm280, %v153, 0
    %v357 = vsel %vm280, %v155, 0
    %359 = vmatprep.subr.mxu0 0.0
    %360 = vmatpush1.xpose.msra.mxu0 %v357
    %361 = vmatprep.subr.mxu0 0.0
    %362 = vmatpush1.xpose.msra.mxu0 0.0
    %363 = vmatprep.subr.mxu0 0.0
    %364 = vmatpush1.xpose.msra.mxu0 0.0
    %365 = vmatprep.subr.mxu0 0.0
    %366 = vmatpush1.xpose.msra.mxu0 0.0
    %367 = vmatprep.subr.mxu0 0.0
    %368 = vmatpush1.xpose.msra.mxu0 0.0
    %369 = vmatprep.subr.mxu0 0.0
    %370 = vmatpush1.xpose.msra.mxu0 0.0
    %371 = vmatprep.subr.mxu0 0.0
    %372 = vmatpush1.xpose.msra.mxu0 0.0
    %373 = vmatprep.subr.mxu0 0.0
    %374 = vmatpush1.xpose.msra.mxu0 0.0
    %375 = vmatprep.subr.mxu0 0.0
    %376 = vmatpush1.xpose.msra.mxu0 0.0
    %377 = vmatprep.subr.mxu0 0.0
    %378 = vmatpush1.xpose.msra.mxu0 0.0
    %379 = vmatprep.subr.mxu0 0.0
    %380 = vmatpush1.xpose.msra.mxu0 0.0
    %381 = vmatprep.subr.mxu0 0.0
    %382 = vmatpush1.xpose.msra.mxu0 0.0
    %383 = vmatprep.subr.mxu0 0.0
    %384 = vmatpush1.xpose.msra.mxu0 0.0
    %385 = vmatprep.subr.mxu0 0.0
    %386 = vmatpush1.xpose.msra.mxu0 0.0
    %387 = vmatprep.subr.mxu0 0.0
    %388 = vmatpush1.xpose.msra.mxu0 0.0
    %389 = vmatprep.subr.mxu0 0.0
    %390 = vmatpush1.xpose.msra.mxu0 0.0
    %391 = vmatprep.subr.mxu0 0.0
    %392 = vmatpush1.xpose.msra.mxu0 0.0
    %393 = vmatprep.subr.mxu0 0.0
    %394 = vmatpush1.xpose.msra.mxu0 0.0
    %395 = vmatprep.subr.mxu0 0.0
    %396 = vmatpush1.xpose.msra.mxu0 0.0
    %397 = vmatprep.subr.mxu0 0.0
    %398 = vmatpush1.xpose.msra.mxu0 0.0
    %399 = vmatprep.subr.mxu0 0.0
    %400 = vmatpush1.xpose.msra.mxu0 0.0
    %401 = vmatprep.subr.mxu0 0.0
    %402 = vmatpush1.xpose.msra.mxu0 0.0
    %403 = vmatprep.subr.mxu0 0.0
    %404 = vmatpush1.xpose.msra.mxu0 0.0
    %405 = vmatprep.subr.mxu0 0.0
    %406 = vmatpush1.xpose.msra.mxu0 0.0
    %407 = vmatprep.subr.mxu0 0.0
    %408 = vmatpush1.xpose.msra.mxu0 0.0
    %409 = vmatprep.subr.mxu0 0.0
    %410 = vmatpush1.xpose.msra.mxu0 0.0
    %411 = vmatprep.subr.mxu0 0.0
    %412 = vmatpush1.xpose.msra.mxu0 0.0
    %413 = vmatprep.subr.mxu0 0.0
    %414 = vmatpush1.xpose.msra.mxu0 0.0
    %415 = vmatprep.subr.mxu0 0.0
    %416 = vmatpush1.xpose.msra.mxu0 0.0
    %417 = vmatprep.subr.mxu0 0.0
    %418 = vmatpush1.xpose.msra.mxu0 0.0
    %419 = vmatprep.subr.mxu0 0.0
    %420 = vmatpush1.xpose.msra.mxu0 0.0
    %421 = vmatprep.subr.mxu0 0.0
    %422 = vmatpush1.xpose.msra.mxu0 0.0
    %423 = vmatprep.mubr.f32.mxu0 0.0
    %424 = vmatmul.mubr.f32.gmra.mrb[0].mxu0 %v355
    %v425 = vpop.f32.mrb[0].mxu0
    %v426 = vadd.f32 0.0, %v425
    %v427 = vpop.f32.mrb[0].mxu0
    %428 = vdwg.mxu0
    %v429 = vsel %vm280, %v235, 0
    %v431 = vsel %vm280, %v249, 0
    %433 = vmatprep.subr.mxu0 0.0
    %434 = vmatpush1.xpose.msra.mxu0 %v431
    %435 = vmatprep.subr.mxu0 0.0
    %436 = vmatpush1.xpose.msra.mxu0 0.0
    %437 = vmatprep.subr.mxu0 0.0
    %438 = vmatpush1.xpose.msra.mxu0 0.0
    %439 = vmatprep.subr.mxu0 0.0
    %440 = vmatpush1.xpose.msra.mxu0 0.0
    %441 = vmatprep.subr.mxu0 0.0
    %442 = vmatpush1.xpose.msra.mxu0 0.0
    %443 = vmatprep.subr.mxu0 0.0
    %444 = vmatpush1.xpose.msra.mxu0 0.0
    %445 = vmatprep.subr.mxu0 0.0
    %446 = vmatpush1.xpose.msra.mxu0 0.0
    %447 = vmatprep.subr.mxu0 0.0
    %448 = vmatpush1.xpose.msra.mxu0 0.0
    %449 = vmatprep.subr.mxu0 0.0
    %450 = vmatpush1.xpose.msra.mxu0 0.0
    %451 = vmatprep.subr.mxu0 0.0
    %452 = vmatpush1.xpose.msra.mxu0 0.0
    %453 = vmatprep.subr.mxu0 0.0
    %454 = vmatpush1.xpose.msra.mxu0 0.0
    %455 = vmatprep.subr.mxu0 0.0
    %456 = vmatpush1.xpose.msra.mxu0 0.0
    %457 = vmatprep.subr.mxu0 0.0
    %458 = vmatpush1.xpose.msra.mxu0 0.0
    %459 = vmatprep.subr.mxu0 0.0
    %460 = vmatpush1.xpose.msra.mxu0 0.0
    %461 = vmatprep.subr.mxu0 0.0
    %462 = vmatpush1.xpose.msra.mxu0 0.0
    %463 = vmatprep.subr.mxu0 0.0
    %464 = vmatpush1.xpose.msra.mxu0 0.0
    %465 = vmatprep.subr.mxu0 0.0
    %466 = vmatpush1.xpose.msra.mxu0 0.0
    %467 = vmatprep.subr.mxu0 0.0
    %468 = vmatpush1.xpose.msra.mxu0 0.0
    %469 = vmatprep.subr.mxu0 0.0
    %470 = vmatpush1.xpose.msra.mxu0 0.0
    %471 = vmatprep.subr.mxu0 0.0
    %472 = vmatpush1.xpose.msra.mxu0 0.0
    %473 = vmatprep.subr.mxu0 0.0
    %474 = vmatpush1.xpose.msra.mxu0 0.0
    %475 = vmatprep.subr.mxu0 0.0
    %476 = vmatpush1.xpose.msra.mxu0 0.0
    %477 = vmatprep.subr.mxu0 0.0
    %478 = vmatpush1.xpose.msra.mxu0 0.0
    %479 = vmatprep.subr.mxu0 0.0
    %480 = vmatpush1.xpose.msra.mxu0 0.0
    %481 = vmatprep.subr.mxu0 0.0
    %482 = vmatpush1.xpose.msra.mxu0 0.0
    %483 = vmatprep.subr.mxu0 0.0
    %484 = vmatpush1.xpose.msra.mxu0 0.0
    %485 = vmatprep.subr.mxu0 0.0
    %486 = vmatpush1.xpose.msra.mxu0 0.0
    %487 = vmatprep.subr.mxu0 0.0
    %488 = vmatpush1.xpose.msra.mxu0 0.0
    %489 = vmatprep.subr.mxu0 0.0
    %490 = vmatpush1.xpose.msra.mxu0 0.0
    %491 = vmatprep.subr.mxu0 0.0
    %492 = vmatpush1.xpose.msra.mxu0 0.0
    %493 = vmatprep.subr.mxu0 0.0
    %494 = vmatpush1.xpose.msra.mxu0 0.0
    %495 = vmatprep.subr.mxu0 0.0
    %496 = vmatpush1.xpose.msra.mxu0 0.0
    %497 = vmatprep.mubr.f32.mxu0 0.0
    %498 = vmatmul.mubr.f32.gmra.mrb[0].mxu0 %v429
    %v499 = vpop.f32.mrb[0].mxu0
    %v500 = vadd.f32 0.0, %v499
    %v501 = vpop.f32.mrb[0].mxu0
    %502 = vdwg.mxu0
    %v503 = vsel %vm280, %v237, 0
    %v505 = vsel %vm280, %v251, 0
    %507 = vmatprep.subr.mxu0 0.0
    %508 = vmatpush1.xpose.msra.mxu0 %v505
    %509 = vmatprep.subr.mxu0 0.0
    %510 = vmatpush1.xpose.msra.mxu0 0.0
    %511 = vmatprep.subr.mxu0 0.0
    %512 = vmatpush1.xpose.msra.mxu0 0.0
    %513 = vmatprep.subr.mxu0 0.0
    %514 = vmatpush1.xpose.msra.mxu0 0.0
    %515 = vmatprep.subr.mxu0 0.0
    %516 = vmatpush1.xpose.msra.mxu0 0.0
    %517 = vmatprep.subr.mxu0 0.0
    %518 = vmatpush1.xpose.msra.mxu0 0.0
    %519 = vmatprep.subr.mxu0 0.0
    %520 = vmatpush1.xpose.msra.mxu0 0.0
    %521 = vmatprep.subr.mxu0 0.0
    %522 = vmatpush1.xpose.msra.mxu0 0.0
    %523 = vmatprep.subr.mxu0 0.0
    %524 = vmatpush1.xpose.msra.mxu0 0.0
    %525 = vmatprep.subr.mxu0 0.0
    %526 = vmatpush1.xpose.msra.mxu0 0.0
    %527 = vmatprep.subr.mxu0 0.0
    %528 = vmatpush1.xpose.msra.mxu0 0.0
    %529 = vmatprep.subr.mxu0 0.0
    %530 = vmatpush1.xpose.msra.mxu0 0.0
    %531 = vmatprep.subr.mxu0 0.0
    %532 = vmatpush1.xpose.msra.mxu0 0.0
    %533 = vmatprep.subr.mxu0 0.0
    %534 = vmatpush1.xpose.msra.mxu0 0.0
    %535 = vmatprep.subr.mxu0 0.0
    %536 = vmatpush1.xpose.msra.mxu0 0.0
    %537 = vmatprep.subr.mxu0 0.0
    %538 = vmatpush1.xpose.msra.mxu0 0.0
    %539 = vmatprep.subr.mxu0 0.0
    %540 = vmatpush1.xpose.msra.mxu0 0.0
    %541 = vmatprep.subr.mxu0 0.0
    %542 = vmatpush1.xpose.msra.mxu0 0.0
    %543 = vmatprep.subr.mxu0 0.0
    %544 = vmatpush1.xpose.msra.mxu0 0.0
    %545 = vmatprep.subr.mxu0 0.0
    %546 = vmatpush1.xpose.msra.mxu0 0.0
    %547 = vmatprep.subr.mxu0 0.0
    %548 = vmatpush1.xpose.msra.mxu0 0.0
    %549 = vmatprep.subr.mxu0 0.0
    %550 = vmatpush1.xpose.msra.mxu0 0.0
    %551 = vmatprep.subr.mxu0 0.0
    %552 = vmatpush1.xpose.msra.mxu0 0.0
    %553 = vmatprep.subr.mxu0 0.0
    %554 = vmatpush1.xpose.msra.mxu0 0.0
    %555 = vmatprep.subr.mxu0 0.0
    %556 = vmatpush1.xpose.msra.mxu0 0.0
    %557 = vmatprep.subr.mxu0 0.0
    %558 = vmatpush1.xpose.msra.mxu0 0.0
    %559 = vmatprep.subr.mxu0 0.0
    %560 = vmatpush1.xpose.msra.mxu0 0.0
    %561 = vmatprep.subr.mxu0 0.0
    %562 = vmatpush1.xpose.msra.mxu0 0.0
    %563 = vmatprep.subr.mxu0 0.0
    %564 = vmatpush1.xpose.msra.mxu0 0.0
    %565 = vmatprep.subr.mxu0 0.0
    %566 = vmatpush1.xpose.msra.mxu0 0.0
    %567 = vmatprep.subr.mxu0 0.0
    %568 = vmatpush1.xpose.msra.mxu0 0.0
    %569 = vmatprep.subr.mxu0 0.0
    %570 = vmatpush1.xpose.msra.mxu0 0.0
    %571 = vmatprep.mubr.f32.mxu0 0.0
    %572 = vmatmul.mubr.f32.gmra.mrb[0].mxu0 %v503
    %v573 = vpop.f32.mrb[0].mxu0
    %v574 = vadd.f32 0.0, %v573
    %v575 = vpop.f32.mrb[0].mxu0
    %576 = vdwg.mxu0
    %v577 = vsel %vm280, %v239, 0
    %v579 = vsel %vm280, %v253, 0
    %581 = vmatprep.subr.mxu0 0.0
    %582 = vmatpush1.xpose.msra.mxu0 %v579
    %583 = vmatprep.subr.mxu0 0.0
    %584 = vmatpush1.xpose.msra.mxu0 0.0
    %585 = vmatprep.subr.mxu0 0.0
    %586 = vmatpush1.xpose.msra.mxu0 0.0
    %587 = vmatprep.subr.mxu0 0.0
    %588 = vmatpush1.xpose.msra.mxu0 0.0
    %589 = vmatprep.subr.mxu0 0.0
    %590 = vmatpush1.xpose.msra.mxu0 0.0
    %591 = vmatprep.subr.mxu0 0.0
    %592 = vmatpush1.xpose.msra.mxu0 0.0
    %593 = vmatprep.subr.mxu0 0.0
    %594 = vmatpush1.xpose.msra.mxu0 0.0
    %595 = vmatprep.subr.mxu0 0.0
    %596 = vmatpush1.xpose.msra.mxu0 0.0
    %597 = vmatprep.subr.mxu0 0.0
    %598 = vmatpush1.xpose.msra.mxu0 0.0
    %599 = vmatprep.subr.mxu0 0.0
    %600 = vmatpush1.xpose.msra.mxu0 0.0
    %601 = vmatprep.subr.mxu0 0.0
    %602 = vmatpush1.xpose.msra.mxu0 0.0
    %603 = vmatprep.subr.mxu0 0.0
    %604 = vmatpush1.xpose.msra.mxu0 0.0
    %605 = vmatprep.subr.mxu0 0.0
    %606 = vmatpush1.xpose.msra.mxu0 0.0
    %607 = vmatprep.subr.mxu0 0.0
    %608 = vmatpush1.xpose.msra.mxu0 0.0
    %609 = vmatprep.subr.mxu0 0.0
    %610 = vmatpush1.xpose.msra.mxu0 0.0
    %611 = vmatprep.subr.mxu0 0.0
    %612 = vmatpush1.xpose.msra.mxu0 0.0
    %613 = vmatprep.subr.mxu0 0.0
    %614 = vmatpush1.xpose.msra.mxu0 0.0
    %615 = vmatprep.subr.mxu0 0.0
    %616 = vmatpush1.xpose.msra.mxu0 0.0
    %617 = vmatprep.subr.mxu0 0.0
    %618 = vmatpush1.xpose.msra.mxu0 0.0
    %619 = vmatprep.subr.mxu0 0.0
    %620 = vmatpush1.xpose.msra.mxu0 0.0
    %621 = vmatprep.subr.mxu0 0.0
    %622 = vmatpush1.xpose.msra.mxu0 0.0
    %623 = vmatprep.subr.mxu0 0.0
    %624 = vmatpush1.xpose.msra.mxu0 0.0
    %625 = vmatprep.subr.mxu0 0.0
    %626 = vmatpush1.xpose.msra.mxu0 0.0
    %627 = vmatprep.subr.mxu0 0.0
    %628 = vmatpush1.xpose.msra.mxu0 0.0
    %629 = vmatprep.subr.mxu0 0.0
    %630 = vmatpush1.xpose.msra.mxu0 0.0
    %631 = vmatprep.subr.mxu0 0.0
    %632 = vmatpush1.xpose.msra.mxu0 0.0
    %633 = vmatprep.subr.mxu0 0.0
    %634 = vmatpush1.xpose.msra.mxu0 0.0
    %635 = vmatprep.subr.mxu0 0.0
    %636 = vmatpush1.xpose.msra.mxu0 0.0
    %637 = vmatprep.subr.mxu0 0.0
    %638 = vmatpush1.xpose.msra.mxu0 0.0
    %639 = vmatprep.subr.mxu0 0.0
    %640 = vmatpush1.xpose.msra.mxu0 0.0
    %641 = vmatprep.subr.mxu0 0.0
    %642 = vmatpush1.xpose.msra.mxu0 0.0
    %643 = vmatprep.subr.mxu0 0.0
    %644 = vmatpush1.xpose.msra.mxu0 0.0
    %645 = vmatprep.mubr.f32.mxu0 0.0
    %646 = vmatmul.mubr.f32.gmra.mrb[0].mxu0 %v577
    %v647 = vpop.f32.mrb[0].mxu0
    %v648 = vadd.f32 0.0, %v647
    %v649 = vpop.f32.mrb[0].mxu0
    %650 = vdwg.mxu0
    %v651 = vsel %vm280, %v241, 0
    %v653 = vsel %vm280, %v255, 0
    %655 = vmatprep.subr.mxu0 0.0
    %656 = vmatpush1.xpose.msra.mxu0 %v653
    %657 = vmatprep.subr.mxu0 0.0
    %658 = vmatpush1.xpose.msra.mxu0 0.0
    %659 = vmatprep.subr.mxu0 0.0
    %660 = vmatpush1.xpose.msra.mxu0 0.0
    %661 = vmatprep.subr.mxu0 0.0
    %662 = vmatpush1.xpose.msra.mxu0 0.0
    %663 = vmatprep.subr.mxu0 0.0
    %664 = vmatpush1.xpose.msra.mxu0 0.0
    %665 = vmatprep.subr.mxu0 0.0
    %666 = vmatpush1.xpose.msra.mxu0 0.0
    %667 = vmatprep.subr.mxu0 0.0
    %668 = vmatpush1.xpose.msra.mxu0 0.0
    %669 = vmatprep.subr.mxu0 0.0
    %670 = vmatpush1.xpose.msra.mxu0 0.0
    %671 = vmatprep.subr.mxu0 0.0
    %672 = vmatpush1.xpose.msra.mxu0 0.0
    %673 = vmatprep.subr.mxu0 0.0
    %674 = vmatpush1.xpose.msra.mxu0 0.0
    %675 = vmatprep.subr.mxu0 0.0
    %676 = vmatpush1.xpose.msra.mxu0 0.0
    %677 = vmatprep.subr.mxu0 0.0
    %678 = vmatpush1.xpose.msra.mxu0 0.0
    %679 = vmatprep.subr.mxu0 0.0
    %680 = vmatpush1.xpose.msra.mxu0 0.0
    %681 = vmatprep.subr.mxu0 0.0
    %682 = vmatpush1.xpose.msra.mxu0 0.0
    %683 = vmatprep.subr.mxu0 0.0
    %684 = vmatpush1.xpose.msra.mxu0 0.0
    %685 = vmatprep.subr.mxu0 0.0
    %686 = vmatpush1.xpose.msra.mxu0 0.0
    %687 = vmatprep.subr.mxu0 0.0
    %688 = vmatpush1.xpose.msra.mxu0 0.0
    %689 = vmatprep.subr.mxu0 0.0
    %690 = vmatpush1.xpose.msra.mxu0 0.0
    %691 = vmatprep.subr.mxu0 0.0
    %692 = vmatpush1.xpose.msra.mxu0 0.0
    %693 = vmatprep.subr.mxu0 0.0
    %694 = vmatpush1.xpose.msra.mxu0 0.0
    %695 = vmatprep.subr.mxu0 0.0
    %696 = vmatpush1.xpose.msra.mxu0 0.0
    %697 = vmatprep.subr.mxu0 0.0
    %698 = vmatpush1.xpose.msra.mxu0 0.0
    %699 = vmatprep.subr.mxu0 0.0
    %700 = vmatpush1.xpose.msra.mxu0 0.0
    %701 = vmatprep.subr.mxu0 0.0
    %702 = vmatpush1.xpose.msra.mxu0 0.0
    %703 = vmatprep.subr.mxu0 0.0
    %704 = vmatpush1.xpose.msra.mxu0 0.0
    %705 = vmatprep.subr.mxu0 0.0
    %706 = vmatpush1.xpose.msra.mxu0 0.0
    %707 = vmatprep.subr.mxu0 0.0
    %708 = vmatpush1.xpose.msra.mxu0 0.0
    %709 = vmatprep.subr.mxu0 0.0
    %710 = vmatpush1.xpose.msra.mxu0 0.0
    %711 = vmatprep.subr.mxu0 0.0
    %712 = vmatpush1.xpose.msra.mxu0 0.0
    %713 = vmatprep.subr.mxu0 0.0
    %714 = vmatpush1.xpose.msra.mxu0 0.0
    %715 = vmatprep.subr.mxu0 0.0
    %716 = vmatpush1.xpose.msra.mxu0 0.0
    %717 = vmatprep.subr.mxu0 0.0
    %718 = vmatpush1.xpose.msra.mxu0 0.0
    %719 = vmatprep.mubr.f32.mxu0 0.0
    %720 = vmatmul.mubr.f32.gmra.mrb[0].mxu0 %v651
    %v721 = vpop.f32.mrb[0].mxu0
    %v722 = vadd.f32 0.0, %v721
    %v723 = vpop.f32.mrb[0].mxu0
    %724 = vdwg.mxu0
    %v725 = vsel %vm280, %v243, 0
    %v727 = vsel %vm280, %v257, 0
    %729 = vmatprep.subr.mxu0 0.0
    %730 = vmatpush1.xpose.msra.mxu0 %v727
    %731 = vmatprep.subr.mxu0 0.0
    %732 = vmatpush1.xpose.msra.mxu0 0.0
    %733 = vmatprep.subr.mxu0 0.0
    %734 = vmatpush1.xpose.msra.mxu0 0.0
    %735 = vmatprep.subr.mxu0 0.0
    %736 = vmatpush1.xpose.msra.mxu0 0.0
    %737 = vmatprep.subr.mxu0 0.0
    %738 = vmatpush1.xpose.msra.mxu0 0.0
    %739 = vmatprep.subr.mxu0 0.0
    %740 = vmatpush1.xpose.msra.mxu0 0.0
    %741 = vmatprep.subr.mxu0 0.0
    %742 = vmatpush1.xpose.msra.mxu0 0.0
    %743 = vmatprep.subr.mxu0 0.0
    %744 = vmatpush1.xpose.msra.mxu0 0.0
    %745 = vmatprep.subr.mxu0 0.0
    %746 = vmatpush1.xpose.msra.mxu0 0.0
    %747 = vmatprep.subr.mxu0 0.0
    %748 = vmatpush1.xpose.msra.mxu0 0.0
    %749 = vmatprep.subr.mxu0 0.0
    %750 = vmatpush1.xpose.msra.mxu0 0.0
    %751 = vmatprep.subr.mxu0 0.0
    %752 = vmatpush1.xpose.msra.mxu0 0.0
    %753 = vmatprep.subr.mxu0 0.0
    %754 = vmatpush1.xpose.msra.mxu0 0.0
    %755 = vmatprep.subr.mxu0 0.0
    %756 = vmatpush1.xpose.msra.mxu0 0.0
    %757 = vmatprep.subr.mxu0 0.0
    %758 = vmatpush1.xpose.msra.mxu0 0.0
    %759 = vmatprep.subr.mxu0 0.0
    %760 = vmatpush1.xpose.msra.mxu0 0.0
    %761 = vmatprep.subr.mxu0 0.0
    %762 = vmatpush1.xpose.msra.mxu0 0.0
    %763 = vmatprep.subr.mxu0 0.0
    %764 = vmatpush1.xpose.msra.mxu0 0.0
    %765 = vmatprep.subr.mxu0 0.0
    %766 = vmatpush1.xpose.msra.mxu0 0.0
    %767 = vmatprep.subr.mxu0 0.0
    %768 = vmatpush1.xpose.msra.mxu0 0.0
    %769 = vmatprep.subr.mxu0 0.0
    %770 = vmatpush1.xpose.msra.mxu0 0.0
    %771 = vmatprep.subr.mxu0 0.0
    %772 = vmatpush1.xpose.msra.mxu0 0.0
    %773 = vmatprep.subr.mxu0 0.0
    %774 = vmatpush1.xpose.msra.mxu0 0.0
    %775 = vmatprep.subr.mxu0 0.0
    %776 = vmatpush1.xpose.msra.mxu0 0.0
    %777 = vmatprep.subr.mxu0 0.0
    %778 = vmatpush1.xpose.msra.mxu0 0.0
    %779 = vmatprep.subr.mxu0 0.0
    %780 = vmatpush1.xpose.msra.mxu0 0.0
    %781 = vmatprep.subr.mxu0 0.0
    %782 = vmatpush1.xpose.msra.mxu0 0.0
    %783 = vmatprep.subr.mxu0 0.0
    %784 = vmatpush1.xpose.msra.mxu0 0.0
    %785 = vmatprep.subr.mxu0 0.0
    %786 = vmatpush1.xpose.msra.mxu0 0.0
    %787 = vmatprep.subr.mxu0 0.0
    %788 = vmatpush1.xpose.msra.mxu0 0.0
    %789 = vmatprep.subr.mxu0 0.0
    %790 = vmatpush1.xpose.msra.mxu0 0.0
    %791 = vmatprep.subr.mxu0 0.0
    %792 = vmatpush1.xpose.msra.mxu0 0.0
    %793 = vmatprep.mubr.f32.mxu0 0.0
    %794 = vmatmul.mubr.f32.gmra.mrb[0].mxu0 %v725
    %v795 = vpop.f32.mrb[0].mxu0
    %v796 = vadd.f32 0.0, %v795
    %v797 = vpop.f32.mrb[0].mxu0
    %798 = vdwg.mxu0
    %v799 = vsel %vm280, %v245, 0
    %v801 = vsel %vm280, %v259, 0
    %803 = vmatprep.subr.mxu0 0.0
    %804 = vmatpush1.xpose.msra.mxu0 %v801
    %805 = vmatprep.subr.mxu0 0.0
    %806 = vmatpush1.xpose.msra.mxu0 0.0
    %807 = vmatprep.subr.mxu0 0.0
    %808 = vmatpush1.xpose.msra.mxu0 0.0
    %809 = vmatprep.subr.mxu0 0.0
    %810 = vmatpush1.xpose.msra.mxu0 0.0
    %811 = vmatprep.subr.mxu0 0.0
    %812 = vmatpush1.xpose.msra.mxu0 0.0
    %813 = vmatprep.subr.mxu0 0.0
    %814 = vmatpush1.xpose.msra.mxu0 0.0
    %815 = vmatprep.subr.mxu0 0.0
    %816 = vmatpush1.xpose.msra.mxu0 0.0
    %817 = vmatprep.subr.mxu0 0.0
    %818 = vmatpush1.xpose.msra.mxu0 0.0
    %819 = vmatprep.subr.mxu0 0.0
    %820 = vmatpush1.xpose.msra.mxu0 0.0
    %821 = vmatprep.subr.mxu0 0.0
    %822 = vmatpush1.xpose.msra.mxu0 0.0
    %823 = vmatprep.subr.mxu0 0.0
    %824 = vmatpush1.xpose.msra.mxu0 0.0
    %825 = vmatprep.subr.mxu0 0.0
    %826 = vmatpush1.xpose.msra.mxu0 0.0
    %827 = vmatprep.subr.mxu0 0.0
    %828 = vmatpush1.xpose.msra.mxu0 0.0
    %829 = vmatprep.subr.mxu0 0.0
    %830 = vmatpush1.xpose.msra.mxu0 0.0
    %831 = vmatprep.subr.mxu0 0.0
    %832 = vmatpush1.xpose.msra.mxu0 0.0
    %833 = vmatprep.subr.mxu0 0.0
    %834 = vmatpush1.xpose.msra.mxu0 0.0
    %835 = vmatprep.subr.mxu0 0.0
    %836 = vmatpush1.xpose.msra.mxu0 0.0
    %837 = vmatprep.subr.mxu0 0.0
    %838 = vmatpush1.xpose.msra.mxu0 0.0
    %839 = vmatprep.subr.mxu0 0.0
    %840 = vmatpush1.xpose.msra.mxu0 0.0
    %841 = vmatprep.subr.mxu0 0.0
    %842 = vmatpush1.xpose.msra.mxu0 0.0
    %843 = vmatprep.subr.mxu0 0.0
    %844 = vmatpush1.xpose.msra.mxu0 0.0
    %845 = vmatprep.subr.mxu0 0.0
    %846 = vmatpush1.xpose.msra.mxu0 0.0
    %847 = vmatprep.subr.mxu0 0.0
    %848 = vmatpush1.xpose.msra.mxu0 0.0
    %849 = vmatprep.subr.mxu0 0.0
    %850 = vmatpush1.xpose.msra.mxu0 0.0
    %851 = vmatprep.subr.mxu0 0.0
    %852 = vmatpush1.xpose.msra.mxu0 0.0
    %853 = vmatprep.subr.mxu0 0.0
    %854 = vmatpush1.xpose.msra.mxu0 0.0
    %855 = vmatprep.subr.mxu0 0.0
    %856 = vmatpush1.xpose.msra.mxu0 0.0
    %857 = vmatprep.subr.mxu0 0.0
    %858 = vmatpush1.xpose.msra.mxu0 0.0
    %859 = vmatprep.subr.mxu0 0.0
    %860 = vmatpush1.xpose.msra.mxu0 0.0
    %861 = vmatprep.subr.mxu0 0.0
    %862 = vmatpush1.xpose.msra.mxu0 0.0
    %863 = vmatprep.subr.mxu0 0.0
    %864 = vmatpush1.xpose.msra.mxu0 0.0
    %865 = vmatprep.subr.mxu0 0.0
    %866 = vmatpush1.xpose.msra.mxu0 0.0
    %867 = vmatprep.mubr.f32.mxu0 0.0
    %868 = vmatmul.mubr.f32.gmra.mrb[0].mxu0 %v799
    %v869 = vpop.f32.mrb[0].mxu0
    %v870 = vadd.f32 0.0, %v869
    %v871 = vpop.f32.mrb[0].mxu0
    %872 = vdwg.mxu0
    %v873 = vsel %vm280, %v352, -inf
    %874 = vmax.xlane.f32.xlu0 %v873
    %v875 = vpop.xlane.xlu0 %874
    %v876 = vsel %vm280, %v426, -inf
    %877 = vmax.xlane.f32.xlu0 %v876
    %v878 = vpop.xlane.xlu0 %877
    %v879 = vsel %vm280, %v500, -inf
    %880 = vmax.xlane.f32.xlu0 %v879
    %v881 = vpop.xlane.xlu0 %880
    %v882 = vsel %vm280, %v574, -inf
    %883 = vmax.xlane.f32.xlu0 %v882
    %v884 = vpop.xlane.xlu0 %883
    %v885 = vsel %vm280, %v648, -inf
    %886 = vmax.xlane.f32.xlu0 %v885
    %v887 = vpop.xlane.xlu0 %886
    %v888 = vsel %vm280, %v722, -inf
    %889 = vmax.xlane.f32.xlu0 %v888
    %v890 = vpop.xlane.xlu0 %889
    %v891 = vsel %vm280, %v796, -inf
    %892 = vmax.xlane.f32.xlu0 %v891
    %v893 = vpop.xlane.xlu0 %892
    %v894 = vsel %vm280, %v870, -inf
    %895 = vmax.xlane.f32.xlu0 %v894
    %v896 = vpop.xlane.xlu0 %895
    %v897 = vsub.f32 %v352, %v875
    %v898 = vsub.f32 %v426, %v878
    %v899 = vsub.f32 %v500, %v881
    %v900 = vsub.f32 %v574, %v884
    %v901 = vsub.f32 %v648, %v887
    %v902 = vsub.f32 %v722, %v890
    %v903 = vsub.f32 %v796, %v893
    %v904 = vsub.f32 %v870, %v896
    %v905 = vmul.f32 %v897, 1.442695
    %v906 = vpow.pop %v905
    %v907 = vmul.f32 %v898, 1.442695
    %v908 = vpow.pop %v907
    %v909 = vmul.f32 %v899, 1.442695
    %v910 = vpow.pop %v909
    %v911 = vmul.f32 %v900, 1.442695
    %v912 = vpow.pop %v911
    %v913 = vmul.f32 %v901, 1.442695
    %v914 = vpow.pop %v913
    %v915 = vmul.f32 %v902, 1.442695
    %v916 = vpow.pop %v915
    %v917 = vmul.f32 %v903, 1.442695
    %v918 = vpow.pop %v917
    %v919 = vmul.f32 %v904, 1.442695
    %v920 = vpow.pop %v919
    %v921 = vsel %vm280, %v906, 0.0
    %922 = vadd.xlane.f32.xlu0 %v921
    %v923 = vpop.xlane.xlu0 %922
    %v924 = vsel %vm280, %v908, 0.0
    %925 = vadd.xlane.f32.xlu0 %v924
    %v926 = vpop.xlane.xlu0 %925
    %v927 = vsel %vm280, %v910, 0.0
    %928 = vadd.xlane.f32.xlu0 %v927
    %v929 = vpop.xlane.xlu0 %928
    %v930 = vsel %vm280, %v912, 0.0
    %931 = vadd.xlane.f32.xlu0 %v930
    %v932 = vpop.xlane.xlu0 %931
    %v933 = vsel %vm280, %v914, 0.0
    %934 = vadd.xlane.f32.xlu0 %v933
    %v935 = vpop.xlane.xlu0 %934
    %v936 = vsel %vm280, %v916, 0.0
    %937 = vadd.xlane.f32.xlu0 %v936
    %v938 = vpop.xlane.xlu0 %937
    %v939 = vsel %vm280, %v918, 0.0
    %940 = vadd.xlane.f32.xlu0 %v939
    %v941 = vpop.xlane.xlu0 %940
    %v942 = vsel %vm280, %v920, 0.0
    %943 = vadd.xlane.f32.xlu0 %v942
    %v944 = vpop.xlane.xlu0 %943
    %v945 = vrcp.pop %v923
    %v946 = vrcp.pop %v926
    %v947 = vrcp.pop %v929
    %v948 = vrcp.pop %v932
    %v949 = vrcp.pop %v935
    %v950 = vrcp.pop %v938
    %v951 = vrcp.pop %v941
    %v952 = vrcp.pop %v944
    %v953 = vmul.f32 %v906, %v945
    %v954 = vmul.f32 %v908, %v946
    %v955 = vmul.f32 %v910, %v947
    %v956 = vmul.f32 %v912, %v948
    %v957 = vmul.f32 %v914, %v949
    %v958 = vmul.f32 %v916, %v950
    %v959 = vmul.f32 %v918, %v951
    %v960 = vmul.f32 %v920, %v952
    %v962 = vsel %vm280, %v953, 0
    %964 = vmatprep.subr.mxu0 0.0
    %965 = vmatpush1.msra.mxu0 %v224
    %966 = vmatprep.subr.mxu0 0.0
    %967 = vmatpush1.msra.mxu0 0.0
    %968 = vmatprep.subr.mxu0 0.0
    %969 = vmatpush1.msra.mxu0 0.0
    %970 = vmatprep.subr.mxu0 0.0
    %971 = vmatpush1.msra.mxu0 0.0
    %972 = vmatprep.subr.mxu0 0.0
    %973 = vmatpush1.msra.mxu0 0.0
    %974 = vmatprep.subr.mxu0 0.0
    %975 = vmatpush1.msra.mxu0 0.0
    %976 = vmatprep.subr.mxu0 0.0
    %977 = vmatpush1.msra.mxu0 0.0
    %978 = vmatprep.subr.mxu0 0.0
    %979 = vmatpush1.msra.mxu0 0.0
    %980 = vmatprep.subr.mxu0 0.0
    %981 = vmatpush1.msra.mxu0 0.0
    %982 = vmatprep.subr.mxu0 0.0
    %983 = vmatpush1.msra.mxu0 0.0
    %984 = vmatprep.subr.mxu0 0.0
    %985 = vmatpush1.msra.mxu0 0.0
    %986 = vmatprep.subr.mxu0 0.0
    %987 = vmatpush1.msra.mxu0 0.0
    %988 = vmatprep.subr.mxu0 0.0
    %989 = vmatpush1.msra.mxu0 0.0
    %990 = vmatprep.subr.mxu0 0.0
    %991 = vmatpush1.msra.mxu0 0.0
    %992 = vmatprep.subr.mxu0 0.0
    %993 = vmatpush1.msra.mxu0 0.0
    %994 = vmatprep.subr.mxu0 0.0
    %995 = vmatpush1.msra.mxu0 0.0
    %996 = vmatprep.subr.mxu0 0.0
    %997 = vmatpush1.msra.mxu0 0.0
    %998 = vmatprep.subr.mxu0 0.0
    %999 = vmatpush1.msra.mxu0 0.0
    %1000 = vmatprep.subr.mxu0 0.0
    %1001 = vmatpush1.msra.mxu0 0.0
    %1002 = vmatprep.subr.mxu0 0.0
    %1003 = vmatpush1.msra.mxu0 0.0
    %1004 = vmatprep.subr.mxu0 0.0
    %1005 = vmatpush1.msra.mxu0 0.0
    %1006 = vmatprep.subr.mxu0 0.0
    %1007 = vmatpush1.msra.mxu0 0.0
    %1008 = vmatprep.subr.mxu0 0.0
    %1009 = vmatpush1.msra.mxu0 0.0
    %1010 = vmatprep.subr.mxu0 0.0
    %1011 = vmatpush1.msra.mxu0 0.0
    %1012 = vmatprep.subr.mxu0 0.0
    %1013 = vmatpush1.msra.mxu0 0.0
    %1014 = vmatprep.subr.mxu0 0.0
    %1015 = vmatpush1.msra.mxu0 0.0
    %1016 = vmatprep.subr.mxu0 0.0
    %1017 = vmatpush1.msra.mxu0 0.0
    %1018 = vmatprep.subr.mxu0 0.0
    %1019 = vmatpush1.msra.mxu0 0.0
    %1020 = vmatprep.subr.mxu0 0.0
    %1021 = vmatpush1.msra.mxu0 0.0
    %1022 = vmatprep.subr.mxu0 0.0
    %1023 = vmatpush1.msra.mxu0 0.0
    %1024 = vmatprep.subr.mxu0 0.0
    %1025 = vmatpush1.msra.mxu0 0.0
    %1026 = vmatprep.subr.mxu0 0.0
    %1027 = vmatpush1.msra.mxu0 0.0
    %1028 = vmatprep.mubr.f32.mxu0 0.0
    %1029 = vmatmul.mubr.f32.gmra.mrb[0].mxu0 %v962
    %v1030 = vpop.f32.mrb[0].mxu0
    %v1031 = vadd.f32 0.0, %v1030
    %v1032 = vpop.f32.mrb[0].mxu0
    %1033 = vdwg.mxu0
    %v1035 = vsel %vm280, %v954, 0
    %1037 = vmatprep.subr.mxu0 0.0
    %1038 = vmatpush1.msra.mxu0 %v229
    %1039 = vmatprep.subr.mxu0 0.0
    %1040 = vmatpush1.msra.mxu0 0.0
    %1041 = vmatprep.subr.mxu0 0.0
    %1042 = vmatpush1.msra.mxu0 0.0
    %1043 = vmatprep.subr.mxu0 0.0
    %1044 = vmatpush1.msra.mxu0 0.0
    %1045 = vmatprep.subr.mxu0 0.0
    %1046 = vmatpush1.msra.mxu0 0.0
    %1047 = vmatprep.subr.mxu0 0.0
    %1048 = vmatpush1.msra.mxu0 0.0
    %1049 = vmatprep.subr.mxu0 0.0
    %1050 = vmatpush1.msra.mxu0 0.0
    %1051 = vmatprep.subr.mxu0 0.0
    %1052 = vmatpush1.msra.mxu0 0.0
    %1053 = vmatprep.subr.mxu0 0.0
    %1054 = vmatpush1.msra.mxu0 0.0
    %1055 = vmatprep.subr.mxu0 0.0
    %1056 = vmatpush1.msra.mxu0 0.0
    %1057 = vmatprep.subr.mxu0 0.0
    %1058 = vmatpush1.msra.mxu0 0.0
    %1059 = vmatprep.subr.mxu0 0.0
    %1060 = vmatpush1.msra.mxu0 0.0
    %1061 = vmatprep.subr.mxu0 0.0
    %1062 = vmatpush1.msra.mxu0 0.0
    %1063 = vmatprep.subr.mxu0 0.0
    %1064 = vmatpush1.msra.mxu0 0.0
    %1065 = vmatprep.subr.mxu0 0.0
    %1066 = vmatpush1.msra.mxu0 0.0
    %1067 = vmatprep.subr.mxu0 0.0
    %1068 = vmatpush1.msra.mxu0 0.0
    %1069 = vmatprep.subr.mxu0 0.0
    %1070 = vmatpush1.msra.mxu0 0.0
    %1071 = vmatprep.subr.mxu0 0.0
    %1072 = vmatpush1.msra.mxu0 0.0
    %1073 = vmatprep.subr.mxu0 0.0
    %1074 = vmatpush1.msra.mxu0 0.0
    %1075 = vmatprep.subr.mxu0 0.0
    %1076 = vmatpush1.msra.mxu0 0.0
    %1077 = vmatprep.subr.mxu0 0.0
    %1078 = vmatpush1.msra.mxu0 0.0
    %1079 = vmatprep.subr.mxu0 0.0
    %1080 = vmatpush1.msra.mxu0 0.0
    %1081 = vmatprep.subr.mxu0 0.0
    %1082 = vmatpush1.msra.mxu0 0.0
    %1083 = vmatprep.subr.mxu0 0.0
    %1084 = vmatpush1.msra.mxu0 0.0
    %1085 = vmatprep.subr.mxu0 0.0
    %1086 = vmatpush1.msra.mxu0 0.0
    %1087 = vmatprep.subr.mxu0 0.0
    %1088 = vmatpush1.msra.mxu0 0.0
    %1089 = vmatprep.subr.mxu0 0.0
    %1090 = vmatpush1.msra.mxu0 0.0
    %1091 = vmatprep.subr.mxu0 0.0
    %1092 = vmatpush1.msra.mxu0 0.0
    %1093 = vmatprep.subr.mxu0 0.0
    %1094 = vmatpush1.msra.mxu0 0.0
    %1095 = vmatprep.subr.mxu0 0.0
    %1096 = vmatpush1.msra.mxu0 0.0
    %1097 = vmatprep.subr.mxu0 0.0
    %1098 = vmatpush1.msra.mxu0 0.0
    %1099 = vmatprep.subr.mxu0 0.0
    %1100 = vmatpush1.msra.mxu0 0.0
    %1101 = vmatprep.mubr.f32.mxu0 0.0
    %1102 = vmatmul.mubr.f32.gmra.mrb[0].mxu0 %v1035
    %v1103 = vpop.f32.mrb[0].mxu0
    %v1104 = vadd.f32 0.0, %v1103
    %v1105 = vpop.f32.mrb[0].mxu0
    %1106 = vdwg.mxu0
    %v1108 = vsel %vm280, %v955, 0
    %1110 = vmatprep.subr.mxu0 0.0
    %1111 = vmatpush1.msra.mxu0 %v263
    %1112 = vmatprep.subr.mxu0 0.0
    %1113 = vmatpush1.msra.mxu0 0.0
    %1114 = vmatprep.subr.mxu0 0.0
    %1115 = vmatpush1.msra.mxu0 0.0
    %1116 = vmatprep.subr.mxu0 0.0
    %1117 = vmatpush1.msra.mxu0 0.0
    %1118 = vmatprep.subr.mxu0 0.0
    %1119 = vmatpush1.msra.mxu0 0.0
    %1120 = vmatprep.subr.mxu0 0.0
    %1121 = vmatpush1.msra.mxu0 0.0
    %1122 = vmatprep.subr.mxu0 0.0
    %1123 = vmatpush1.msra.mxu0 0.0
    %1124 = vmatprep.subr.mxu0 0.0
    %1125 = vmatpush1.msra.mxu0 0.0
    %1126 = vmatprep.subr.mxu0 0.0
    %1127 = vmatpush1.msra.mxu0 0.0
    %1128 = vmatprep.subr.mxu0 0.0
    %1129 = vmatpush1.msra.mxu0 0.0
    %1130 = vmatprep.subr.mxu0 0.0
    %1131 = vmatpush1.msra.mxu0 0.0
    %1132 = vmatprep.subr.mxu0 0.0
    %1133 = vmatpush1.msra.mxu0 0.0
    %1134 = vmatprep.subr.mxu0 0.0
    %1135 = vmatpush1.msra.mxu0 0.0
    %1136 = vmatprep.subr.mxu0 0.0
    %1137 = vmatpush1.msra.mxu0 0.0
    %1138 = vmatprep.subr.mxu0 0.0
    %1139 = vmatpush1.msra.mxu0 0.0
    %1140 = vmatprep.subr.mxu0 0.0
    %1141 = vmatpush1.msra.mxu0 0.0
    %1142 = vmatprep.subr.mxu0 0.0
    %1143 = vmatpush1.msra.mxu0 0.0
    %1144 = vmatprep.subr.mxu0 0.0
    %1145 = vmatpush1.msra.mxu0 0.0
    %1146 = vmatprep.subr.mxu0 0.0
    %1147 = vmatpush1.msra.mxu0 0.0
    %1148 = vmatprep.subr.mxu0 0.0
    %1149 = vmatpush1.msra.mxu0 0.0
    %1150 = vmatprep.subr.mxu0 0.0
    %1151 = vmatpush1.msra.mxu0 0.0
    %1152 = vmatprep.subr.mxu0 0.0
    %1153 = vmatpush1.msra.mxu0 0.0
    %1154 = vmatprep.subr.mxu0 0.0
    %1155 = vmatpush1.msra.mxu0 0.0
    %1156 = vmatprep.subr.mxu0 0.0
    %1157 = vmatpush1.msra.mxu0 0.0
    %1158 = vmatprep.subr.mxu0 0.0
    %1159 = vmatpush1.msra.mxu0 0.0
    %1160 = vmatprep.subr.mxu0 0.0
    %1161 = vmatpush1.msra.mxu0 0.0
    %1162 = vmatprep.subr.mxu0 0.0
    %1163 = vmatpush1.msra.mxu0 0.0
    %1164 = vmatprep.subr.mxu0 0.0
    %1165 = vmatpush1.msra.mxu0 0.0
    %1166 = vmatprep.subr.mxu0 0.0
    %1167 = vmatpush1.msra.mxu0 0.0
    %1168 = vmatprep.subr.mxu0 0.0
    %1169 = vmatpush1.msra.mxu0 0.0
    %1170 = vmatprep.subr.mxu0 0.0
    %1171 = vmatpush1.msra.mxu0 0.0
    %1172 = vmatprep.subr.mxu0 0.0
    %1173 = vmatpush1.msra.mxu0 0.0
    %1174 = vmatprep.mubr.f32.mxu0 0.0
    %1175 = vmatmul.mubr.f32.gmra.mrb[0].mxu0 %v1108
    %v1176 = vpop.f32.mrb[0].mxu0
    %v1177 = vadd.f32 0.0, %v1176
    %v1178 = vpop.f32.mrb[0].mxu0
    %1179 = vdwg.mxu0
    %v1181 = vsel %vm280, %v956, 0
    %1183 = vmatprep.subr.mxu0 0.0
    %1184 = vmatpush1.msra.mxu0 %v265
    %1185 = vmatprep.subr.mxu0 0.0
    %1186 = vmatpush1.msra.mxu0 0.0
    %1187 = vmatprep.subr.mxu0 0.0
    %1188 = vmatpush1.msra.mxu0 0.0
    %1189 = vmatprep.subr.mxu0 0.0
    %1190 = vmatpush1.msra.mxu0 0.0
    %1191 = vmatprep.subr.mxu0 0.0
    %1192 = vmatpush1.msra.mxu0 0.0
    %1193 = vmatprep.subr.mxu0 0.0
    %1194 = vmatpush1.msra.mxu0 0.0
    %1195 = vmatprep.subr.mxu0 0.0
    %1196 = vmatpush1.msra.mxu0 0.0
    %1197 = vmatprep.subr.mxu0 0.0
    %1198 = vmatpush1.msra.mxu0 0.0
    %1199 = vmatprep.subr.mxu0 0.0
    %1200 = vmatpush1.msra.mxu0 0.0
    %1201 = vmatprep.subr.mxu0 0.0
    %1202 = vmatpush1.msra.mxu0 0.0
    %1203 = vmatprep.subr.mxu0 0.0
    %1204 = vmatpush1.msra.mxu0 0.0
    %1205 = vmatprep.subr.mxu0 0.0
    %1206 = vmatpush1.msra.mxu0 0.0
    %1207 = vmatprep.subr.mxu0 0.0
    %1208 = vmatpush1.msra.mxu0 0.0
    %1209 = vmatprep.subr.mxu0 0.0
    %1210 = vmatpush1.msra.mxu0 0.0
    %1211 = vmatprep.subr.mxu0 0.0
    %1212 = vmatpush1.msra.mxu0 0.0
    %1213 = vmatprep.subr.mxu0 0.0
    %1214 = vmatpush1.msra.mxu0 0.0
    %1215 = vmatprep.subr.mxu0 0.0
    %1216 = vmatpush1.msra.mxu0 0.0
    %1217 = vmatprep.subr.mxu0 0.0
    %1218 = vmatpush1.msra.mxu0 0.0
    %1219 = vmatprep.subr.mxu0 0.0
    %1220 = vmatpush1.msra.mxu0 0.0
    %1221 = vmatprep.subr.mxu0 0.0
    %1222 = vmatpush1.msra.mxu0 0.0
    %1223 = vmatprep.subr.mxu0 0.0
    %1224 = vmatpush1.msra.mxu0 0.0
    %1225 = vmatprep.subr.mxu0 0.0
    %1226 = vmatpush1.msra.mxu0 0.0
    %1227 = vmatprep.subr.mxu0 0.0
    %1228 = vmatpush1.msra.mxu0 0.0
    %1229 = vmatprep.subr.mxu0 0.0
    %1230 = vmatpush1.msra.mxu0 0.0
    %1231 = vmatprep.subr.mxu0 0.0
    %1232 = vmatpush1.msra.mxu0 0.0
    %1233 = vmatprep.subr.mxu0 0.0
    %1234 = vmatpush1.msra.mxu0 0.0
    %1235 = vmatprep.subr.mxu0 0.0
    %1236 = vmatpush1.msra.mxu0 0.0
    %1237 = vmatprep.subr.mxu0 0.0
    %1238 = vmatpush1.msra.mxu0 0.0
    %1239 = vmatprep.subr.mxu0 0.0
    %1240 = vmatpush1.msra.mxu0 0.0
    %1241 = vmatprep.subr.mxu0 0.0
    %1242 = vmatpush1.msra.mxu0 0.0
    %1243 = vmatprep.subr.mxu0 0.0
    %1244 = vmatpush1.msra.mxu0 0.0
    %1245 = vmatprep.subr.mxu0 0.0
    %1246 = vmatpush1.msra.mxu0 0.0
    %1247 = vmatprep.mubr.f32.mxu0 0.0
    %1248 = vmatmul.mubr.f32.gmra.mrb[0].mxu0 %v1181
    %v1249 = vpop.f32.mrb[0].mxu0
    %v1250 = vadd.f32 0.0, %v1249
    %v1251 = vpop.f32.mrb[0].mxu0
    %1252 = vdwg.mxu0
    %v1254 = vsel %vm280, %v957, 0
    %1256 = vmatprep.subr.mxu0 0.0
    %1257 = vmatpush1.msra.mxu0 %v269
    %1258 = vmatprep.subr.mxu0 0.0
    %1259 = vmatpush1.msra.mxu0 0.0
    %1260 = vmatprep.subr.mxu0 0.0
    %1261 = vmatpush1.msra.mxu0 0.0
    %1262 = vmatprep.subr.mxu0 0.0
    %1263 = vmatpush1.msra.mxu0 0.0
    %1264 = vmatprep.subr.mxu0 0.0
    %1265 = vmatpush1.msra.mxu0 0.0
    %1266 = vmatprep.subr.mxu0 0.0
    %1267 = vmatpush1.msra.mxu0 0.0
    %1268 = vmatprep.subr.mxu0 0.0
    %1269 = vmatpush1.msra.mxu0 0.0
    %1270 = vmatprep.subr.mxu0 0.0
    %1271 = vmatpush1.msra.mxu0 0.0
    %1272 = vmatprep.subr.mxu0 0.0
    %1273 = vmatpush1.msra.mxu0 0.0
    %1274 = vmatprep.subr.mxu0 0.0
    %1275 = vmatpush1.msra.mxu0 0.0
    %1276 = vmatprep.subr.mxu0 0.0
    %1277 = vmatpush1.msra.mxu0 0.0
    %1278 = vmatprep.subr.mxu0 0.0
    %1279 = vmatpush1.msra.mxu0 0.0
    %1280 = vmatprep.subr.mxu0 0.0
    %1281 = vmatpush1.msra.mxu0 0.0
    %1282 = vmatprep.subr.mxu0 0.0
    %1283 = vmatpush1.msra.mxu0 0.0
    %1284 = vmatprep.subr.mxu0 0.0
    %1285 = vmatpush1.msra.mxu0 0.0
    %1286 = vmatprep.subr.mxu0 0.0
    %1287 = vmatpush1.msra.mxu0 0.0
    %1288 = vmatprep.subr.mxu0 0.0
    %1289 = vmatpush1.msra.mxu0 0.0
    %1290 = vmatprep.subr.mxu0 0.0
    %1291 = vmatpush1.msra.mxu0 0.0
    %1292 = vmatprep.subr.mxu0 0.0
    %1293 = vmatpush1.msra.mxu0 0.0
    %1294 = vmatprep.subr.mxu0 0.0
    %1295 = vmatpush1.msra.mxu0 0.0
    %1296 = vmatprep.subr.mxu0 0.0
    %1297 = vmatpush1.msra.mxu0 0.0
    %1298 = vmatprep.subr.mxu0 0.0
    %1299 = vmatpush1.msra.mxu0 0.0
    %1300 = vmatprep.subr.mxu0 0.0
    %1301 = vmatpush1.msra.mxu0 0.0
    %1302 = vmatprep.subr.mxu0 0.0
    %1303 = vmatpush1.msra.mxu0 0.0
    %1304 = vmatprep.subr.mxu0 0.0
    %1305 = vmatpush1.msra.mxu0 0.0
    %1306 = vmatprep.subr.mxu0 0.0
    %1307 = vmatpush1.msra.mxu0 0.0
    %1308 = vmatprep.subr.mxu0 0.0
    %1309 = vmatpush1.msra.mxu0 0.0
    %1310 = vmatprep.subr.mxu0 0.0
    %1311 = vmatpush1.msra.mxu0 0.0
    %1312 = vmatprep.subr.mxu0 0.0
    %1313 = vmatpush1.msra.mxu0 0.0
    %1314 = vmatprep.subr.mxu0 0.0
    %1315 = vmatpush1.msra.mxu0 0.0
    %1316 = vmatprep.subr.mxu0 0.0
    %1317 = vmatpush1.msra.mxu0 0.0
    %1318 = vmatprep.subr.mxu0 0.0
    %1319 = vmatpush1.msra.mxu0 0.0
    %1320 = vmatprep.mubr.f32.mxu0 0.0
    %1321 = vmatmul.mubr.f32.gmra.mrb[0].mxu0 %v1254
    %v1322 = vpop.f32.mrb[0].mxu0
    %v1323 = vadd.f32 0.0, %v1322
    %v1324 = vpop.f32.mrb[0].mxu0
    %1325 = vdwg.mxu0
    %v1327 = vsel %vm280, %v958, 0
    %1329 = vmatprep.subr.mxu0 0.0
    %1330 = vmatpush1.msra.mxu0 %v271
    %1331 = vmatprep.subr.mxu0 0.0
    %1332 = vmatpush1.msra.mxu0 0.0
    %1333 = vmatprep.subr.mxu0 0.0
    %1334 = vmatpush1.msra.mxu0 0.0
    %1335 = vmatprep.subr.mxu0 0.0
    %1336 = vmatpush1.msra.mxu0 0.0
    %1337 = vmatprep.subr.mxu0 0.0
    %1338 = vmatpush1.msra.mxu0 0.0
    %1339 = vmatprep.subr.mxu0 0.0
    %1340 = vmatpush1.msra.mxu0 0.0
    %1341 = vmatprep.subr.mxu0 0.0
    %1342 = vmatpush1.msra.mxu0 0.0
    %1343 = vmatprep.subr.mxu0 0.0
    %1344 = vmatpush1.msra.mxu0 0.0
    %1345 = vmatprep.subr.mxu0 0.0
    %1346 = vmatpush1.msra.mxu0 0.0
    %1347 = vmatprep.subr.mxu0 0.0
    %1348 = vmatpush1.msra.mxu0 0.0
    %1349 = vmatprep.subr.mxu0 0.0
    %1350 = vmatpush1.msra.mxu0 0.0
    %1351 = vmatprep.subr.mxu0 0.0
    %1352 = vmatpush1.msra.mxu0 0.0
    %1353 = vmatprep.subr.mxu0 0.0
    %1354 = vmatpush1.msra.mxu0 0.0
    %1355 = vmatprep.subr.mxu0 0.0
    %1356 = vmatpush1.msra.mxu0 0.0
    %1357 = vmatprep.subr.mxu0 0.0
    %1358 = vmatpush1.msra.mxu0 0.0
    %1359 = vmatprep.subr.mxu0 0.0
    %1360 = vmatpush1.msra.mxu0 0.0
    %1361 = vmatprep.subr.mxu0 0.0
    %1362 = vmatpush1.msra.mxu0 0.0
    %1363 = vmatprep.subr.mxu0 0.0
    %1364 = vmatpush1.msra.mxu0 0.0
    %1365 = vmatprep.subr.mxu0 0.0
    %1366 = vmatpush1.msra.mxu0 0.0
    %1367 = vmatprep.subr.mxu0 0.0
    %1368 = vmatpush1.msra.mxu0 0.0
    %1369 = vmatprep.subr.mxu0 0.0
    %1370 = vmatpush1.msra.mxu0 0.0
    %1371 = vmatprep.subr.mxu0 0.0
    %1372 = vmatpush1.msra.mxu0 0.0
    %1373 = vmatprep.subr.mxu0 0.0
    %1374 = vmatpush1.msra.mxu0 0.0
    %1375 = vmatprep.subr.mxu0 0.0
    %1376 = vmatpush1.msra.mxu0 0.0
    %1377 = vmatprep.subr.mxu0 0.0
    %1378 = vmatpush1.msra.mxu0 0.0
    %1379 = vmatprep.subr.mxu0 0.0
    %1380 = vmatpush1.msra.mxu0 0.0
    %1381 = vmatprep.subr.mxu0 0.0
    %1382 = vmatpush1.msra.mxu0 0.0
    %1383 = vmatprep.subr.mxu0 0.0
    %1384 = vmatpush1.msra.mxu0 0.0
    %1385 = vmatprep.subr.mxu0 0.0
    %1386 = vmatpush1.msra.mxu0 0.0
    %1387 = vmatprep.subr.mxu0 0.0
    %1388 = vmatpush1.msra.mxu0 0.0
    %1389 = vmatprep.subr.mxu0 0.0
    %1390 = vmatpush1.msra.mxu0 0.0
    %1391 = vmatprep.subr.mxu0 0.0
    %1392 = vmatpush1.msra.mxu0 0.0
    %1393 = vmatprep.mubr.f32.mxu0 0.0
    %1394 = vmatmul.mubr.f32.gmra.mrb[0].mxu0 %v1327
    %v1395 = vpop.f32.mrb[0].mxu0
    %v1396 = vadd.f32 0.0, %v1395
    %v1397 = vpop.f32.mrb[0].mxu0
    %1398 = vdwg.mxu0
    %v1400 = vsel %vm280, %v959, 0
    %1402 = vmatprep.subr.mxu0 0.0
    %1403 = vmatpush1.msra.mxu0 %v275
    %1404 = vmatprep.subr.mxu0 0.0
    %1405 = vmatpush1.msra.mxu0 0.0
    %1406 = vmatprep.subr.mxu0 0.0
    %1407 = vmatpush1.msra.mxu0 0.0
    %1408 = vmatprep.subr.mxu0 0.0
    %1409 = vmatpush1.msra.mxu0 0.0
    %1410 = vmatprep.subr.mxu0 0.0
    %1411 = vmatpush1.msra.mxu0 0.0
    %1412 = vmatprep.subr.mxu0 0.0
    %1413 = vmatpush1.msra.mxu0 0.0
    %1414 = vmatprep.subr.mxu0 0.0
    %1415 = vmatpush1.msra.mxu0 0.0
    %1416 = vmatprep.subr.mxu0 0.0
    %1417 = vmatpush1.msra.mxu0 0.0
    %1418 = vmatprep.subr.mxu0 0.0
    %1419 = vmatpush1.msra.mxu0 0.0
    %1420 = vmatprep.subr.mxu0 0.0
    %1421 = vmatpush1.msra.mxu0 0.0
    %1422 = vmatprep.subr.mxu0 0.0
    %1423 = vmatpush1.msra.mxu0 0.0
    %1424 = vmatprep.subr.mxu0 0.0
    %1425 = vmatpush1.msra.mxu0 0.0
    %1426 = vmatprep.subr.mxu0 0.0
    %1427 = vmatpush1.msra.mxu0 0.0
    %1428 = vmatprep.subr.mxu0 0.0
    %1429 = vmatpush1.msra.mxu0 0.0
    %1430 = vmatprep.subr.mxu0 0.0
    %1431 = vmatpush1.msra.mxu0 0.0
    %1432 = vmatprep.subr.mxu0 0.0
    %1433 = vmatpush1.msra.mxu0 0.0
    %1434 = vmatprep.subr.mxu0 0.0
    %1435 = vmatpush1.msra.mxu0 0.0
    %1436 = vmatprep.subr.mxu0 0.0
    %1437 = vmatpush1.msra.mxu0 0.0
    %1438 = vmatprep.subr.mxu0 0.0
    %1439 = vmatpush1.msra.mxu0 0.0
    %1440 = vmatprep.subr.mxu0 0.0
    %1441 = vmatpush1.msra.mxu0 0.0
    %1442 = vmatprep.subr.mxu0 0.0
    %1443 = vmatpush1.msra.mxu0 0.0
    %1444 = vmatprep.subr.mxu0 0.0
    %1445 = vmatpush1.msra.mxu0 0.0
    %1446 = vmatprep.subr.mxu0 0.0
    %1447 = vmatpush1.msra.mxu0 0.0
    %1448 = vmatprep.subr.mxu0 0.0
    %1449 = vmatpush1.msra.mxu0 0.0
    %1450 = vmatprep.subr.mxu0 0.0
    %1451 = vmatpush1.msra.mxu0 0.0
    %1452 = vmatprep.subr.mxu0 0.0
    %1453 = vmatpush1.msra.mxu0 0.0
    %1454 = vmatprep.subr.mxu0 0.0
    %1455 = vmatpush1.msra.mxu0 0.0
    %1456 = vmatprep.subr.mxu0 0.0
    %1457 = vmatpush1.msra.mxu0 0.0
    %1458 = vmatprep.subr.mxu0 0.0
    %1459 = vmatpush1.msra.mxu0 0.0
    %1460 = vmatprep.subr.mxu0 0.0
    %1461 = vmatpush1.msra.mxu0 0.0
    %1462 = vmatprep.subr.mxu0 0.0
    %1463 = vmatpush1.msra.mxu0 0.0
    %1464 = vmatprep.subr.mxu0 0.0
    %1465 = vmatpush1.msra.mxu0 0.0
    %1466 = vmatprep.mubr.f32.mxu0 0.0
    %1467 = vmatmul.mubr.f32.gmra.mrb[0].mxu0 %v1400
    %v1468 = vpop.f32.mrb[0].mxu0
    %v1469 = vadd.f32 0.0, %v1468
    %v1470 = vpop.f32.mrb[0].mxu0
    %1471 = vdwg.mxu0
    %v1473 = vsel %vm280, %v960, 0
    %1475 = vmatprep.subr.mxu0 0.0
    %1476 = vmatpush1.msra.mxu0 %v277
    %1477 = vmatprep.subr.mxu0 0.0
    %1478 = vmatpush1.msra.mxu0 0.0
    %1479 = vmatprep.subr.mxu0 0.0
    %1480 = vmatpush1.msra.mxu0 0.0
    %1481 = vmatprep.subr.mxu0 0.0
    %1482 = vmatpush1.msra.mxu0 0.0
    %1483 = vmatprep.subr.mxu0 0.0
    %1484 = vmatpush1.msra.mxu0 0.0
    %1485 = vmatprep.subr.mxu0 0.0
    %1486 = vmatpush1.msra.mxu0 0.0
    %1487 = vmatprep.subr.mxu0 0.0
    %1488 = vmatpush1.msra.mxu0 0.0
    %1489 = vmatprep.subr.mxu0 0.0
    %1490 = vmatpush1.msra.mxu0 0.0
    %1491 = vmatprep.subr.mxu0 0.0
    %1492 = vmatpush1.msra.mxu0 0.0
    %1493 = vmatprep.subr.mxu0 0.0
    %1494 = vmatpush1.msra.mxu0 0.0
    %1495 = vmatprep.subr.mxu0 0.0
    %1496 = vmatpush1.msra.mxu0 0.0
    %1497 = vmatprep.subr.mxu0 0.0
    %1498 = vmatpush1.msra.mxu0 0.0
    %1499 = vmatprep.subr.mxu0 0.0
    %1500 = vmatpush1.msra.mxu0 0.0
    %1501 = vmatprep.subr.mxu0 0.0
    %1502 = vmatpush1.msra.mxu0 0.0
    %1503 = vmatprep.subr.mxu0 0.0
    %1504 = vmatpush1.msra.mxu0 0.0
    %1505 = vmatprep.subr.mxu0 0.0
    %1506 = vmatpush1.msra.mxu0 0.0
    %1507 = vmatprep.subr.mxu0 0.0
    %1508 = vmatpush1.msra.mxu0 0.0
    %1509 = vmatprep.subr.mxu0 0.0
    %1510 = vmatpush1.msra.mxu0 0.0
    %1511 = vmatprep.subr.mxu0 0.0
    %1512 = vmatpush1.msra.mxu0 0.0
    %1513 = vmatprep.subr.mxu0 0.0
    %1514 = vmatpush1.msra.mxu0 0.0
    %1515 = vmatprep.subr.mxu0 0.0
    %1516 = vmatpush1.msra.mxu0 0.0
    %1517 = vmatprep.subr.mxu0 0.0
    %1518 = vmatpush1.msra.mxu0 0.0
    %1519 = vmatprep.subr.mxu0 0.0
    %1520 = vmatpush1.msra.mxu0 0.0
    %1521 = vmatprep.subr.mxu0 0.0
    %1522 = vmatpush1.msra.mxu0 0.0
    %1523 = vmatprep.subr.mxu0 0.0
    %1524 = vmatpush1.msra.mxu0 0.0
    %1525 = vmatprep.subr.mxu0 0.0
    %1526 = vmatpush1.msra.mxu0 0.0
    %1527 = vmatprep.subr.mxu0 0.0
    %1528 = vmatpush1.msra.mxu0 0.0
    %1529 = vmatprep.subr.mxu0 0.0
    %1530 = vmatpush1.msra.mxu0 0.0
    %1531 = vmatprep.subr.mxu0 0.0
    %1532 = vmatpush1.msra.mxu0 0.0
    %1533 = vmatprep.subr.mxu0 0.0
    %1534 = vmatpush1.msra.mxu0 0.0
    %1535 = vmatprep.subr.mxu0 0.0
    %1536 = vmatpush1.msra.mxu0 0.0
    %1537 = vmatprep.subr.mxu0 0.0
    %1538 = vmatpush1.msra.mxu0 0.0
    %1539 = vmatprep.mubr.f32.mxu0 0.0
    %1540 = vmatmul.mubr.f32.gmra.mrb[0].mxu0 %v1473
    %v1541 = vpop.f32.mrb[0].mxu0
    %v1542 = vadd.f32 0.0, %v1541
    %v1543 = vpop.f32.mrb[0].mxu0
    %1544 = vdwg.mxu0
    %1547 = vrot.lane.b32.xlu0 %v1177, 8
    %v1548 = vpop.permute.xlu0 %1547
    %1549 = vrot.lane.b32.xlu0 %v1250, 8
    %v1550 = vpop.permute.xlu0 %1549
    %1555 = vrot.lane.b32.xlu0 %v1323, 16
    %v1556 = vpop.permute.xlu0 %1555
    %1557 = vrot.lane.b32.xlu0 %v1396, 16
    %v1558 = vpop.permute.xlu0 %1557
    %1563 = vrot.lane.b32.xlu0 %v1469, 24
    %v1564 = vpop.permute.xlu0 %1563
    %1565 = vrot.lane.b32.xlu0 %v1542, 24
    %v1566 = vpop.permute.xlu0 %1565
    %v1569 = vsel %vm280, %v1031, %v1548
    %v1570 = vsel %vm280, %v1104, %v1550
    %vm1571 = vcmask 130048
    %v1572 = vsel %vm1571, %v1569, %v1556
    %v1573 = vsel %vm1571, %v1570, %v1558
    %vm1574 = vcmask 195584
    %v1575 = vsel %vm1574, %v1572, %v1564
    %v1576 = vsel %vm1574, %v1573, %v1566
    %v1577 = vld [vmem:[#allocation7] sm:$0xff]
    %v1578 = vld [vmem:[#allocation7 + $0x8] sm:$0xff]
    %v1579 = vld [vmem:[#allocation7 + $0x10] sm:$0xff]
    %v1580 = vld [vmem:[#allocation7 + $0x18] sm:$0xff]
    %v1581 = vld [vmem:[%s3] sm:$0x1]
    %v1583 = vlaneseq
    %v1584 = vshrl.u32 %v1583, 7
    %v1585 = vsub.s32 0, %v1584
    %v1586 = vrot.slane %v1581, %v1585
    %v1589 = vsel %vm73, %v1575, 0
    %v1592 = vsel %vm73, %v1576, 0
    %1594 = vmatprep.subr.mxu0 0.0
    %1595 = vmatpush1.msra.mxu0 %v1577
    %1596 = vmatprep.subr.mxu0 0.0
    %1597 = vmatpush1.msra.mxu0 %v1578
    %1598 = vmatprep.subr.mxu0 0.0
    %1599 = vmatpush1.msra.mxu0 %v1579
    %1600 = vmatprep.subr.mxu0 0.0
    %1601 = vmatpush1.msra.mxu0 %v1580
    %1602 = vmatprep.subr.mxu0 0.0
    %1603 = vmatpush1.msra.mxu0 0.0
    %1604 = vmatprep.subr.mxu0 0.0
    %1605 = vmatpush1.msra.mxu0 0.0
    %1606 = vmatprep.subr.mxu0 0.0
    %1607 = vmatpush1.msra.mxu0 0.0
    %1608 = vmatprep.subr.mxu0 0.0
    %1609 = vmatpush1.msra.mxu0 0.0
    %1610 = vmatprep.subr.mxu0 0.0
    %1611 = vmatpush1.msra.mxu0 0.0
    %1612 = vmatprep.subr.mxu0 0.0
    %1613 = vmatpush1.msra.mxu0 0.0
    %1614 = vmatprep.subr.mxu0 0.0
    %1615 = vmatpush1.msra.mxu0 0.0
    %1616 = vmatprep.subr.mxu0 0.0
    %1617 = vmatpush1.msra.mxu0 0.0
    %1618 = vmatprep.subr.mxu0 0.0
    %1619 = vmatpush1.msra.mxu0 0.0
    %1620 = vmatprep.subr.mxu0 0.0
    %1621 = vmatpush1.msra.mxu0 0.0
    %1622 = vmatprep.subr.mxu0 0.0
    %1623 = vmatpush1.msra.mxu0 0.0
    %1624 = vmatprep.subr.mxu0 0.0
    %1625 = vmatpush1.msra.mxu0 0.0
    %1626 = vmatprep.subr.mxu0 0.0
    %1627 = vmatpush1.msra.mxu0 0.0
    %1628 = vmatprep.subr.mxu0 0.0
    %1629 = vmatpush1.msra.mxu0 0.0
    %1630 = vmatprep.subr.mxu0 0.0
    %1631 = vmatpush1.msra.mxu0 0.0
    %1632 = vmatprep.subr.mxu0 0.0
    %1633 = vmatpush1.msra.mxu0 0.0
    %1634 = vmatprep.subr.mxu0 0.0
    %1635 = vmatpush1.msra.mxu0 0.0
    %1636 = vmatprep.subr.mxu0 0.0
    %1637 = vmatpush1.msra.mxu0 0.0
    %1638 = vmatprep.subr.mxu0 0.0
    %1639 = vmatpush1.msra.mxu0 0.0
    %1640 = vmatprep.subr.mxu0 0.0
    %1641 = vmatpush1.msra.mxu0 0.0
    %1642 = vmatprep.subr.mxu0 0.0
    %1643 = vmatpush1.msra.mxu0 0.0
    %1644 = vmatprep.subr.mxu0 0.0
    %1645 = vmatpush1.msra.mxu0 0.0
    %1646 = vmatprep.subr.mxu0 0.0
    %1647 = vmatpush1.msra.mxu0 0.0
    %1648 = vmatprep.subr.mxu0 0.0
    %1649 = vmatpush1.msra.mxu0 0.0
    %1650 = vmatprep.subr.mxu0 0.0
    %1651 = vmatpush1.msra.mxu0 0.0
    %1652 = vmatprep.subr.mxu0 0.0
    %1653 = vmatpush1.msra.mxu0 0.0
    %1654 = vmatprep.subr.mxu0 0.0
    %1655 = vmatpush1.msra.mxu0 0.0
    %1656 = vmatprep.subr.mxu0 0.0
    %1657 = vmatpush1.msra.mxu0 0.0
    %1658 = vmatprep.mubr.f32.mxu0 0.0
    %1659 = vmatmul.mubr.f32.gmra.mrb[0].mxu0 %v1589
    %v1660 = vpop.f32.mrb[0].mxu0
    %v1661 = vadd.f32 %v1586, %v1660
    %v1662 = vpop.f32.mrb[0].mxu0
    %1663 = vmatprep.mubr.f32.mxu0 0.0
    %1664 = vmatmul.mubr.f32.gmra.mrb[0].mxu0 %v1592
    %v1665 = vpop.f32.mrb[0].mxu0
    %v1666 = vadd.f32 %v1586, %v1665
    %v1667 = vpop.f32.mrb[0].mxu0
    %1668 = vdwg.mxu0
    %1669 = vst.msk [vmem:[#allocation8] sm:$0xff] %vm73, %v1661
    %1670 = vst.msk [vmem:[#allocation8 + $0x8] sm:$0xff] %vm73, %v1666
    // Predicated region
    $region30: #{tpu_custom_call.1} parent=1 // pred_check
      _
    $region31: #{tpu_custom_call.1} parent=1 // pred_check_branch
      %1672 = sbr.rel (0) target = $region33
    $region32: #{tpu_custom_call.1} parent=1 // pred_region
      %s1674 = ssub.s32 256, 256
      %1675 = vsyncadd [#allocation4], %s1674
      %s1676 = sshll.u32 [#allocation8], 4
      %s1677 = int_to_ptr.vmem [resolvable:$true] %s1676
      %1682 = dma.vmem_to_hbm [thread:$0]  %s1677, 256, %s4, [#allocation4], 128, 128, 8
    $region33: #{tpu_custom_call.1} parent=1 // pred_fallthru
      _
    // Predicated region
    $region34: #{tpu_custom_call.1} parent=1 // pred_check
      _
    $region35: #{tpu_custom_call.1} parent=1 // pred_check_branch
      %1684 = sbr.rel (0) target = $region37
    $region36: #{tpu_custom_call.1} parent=1 // pred_region
      %1685 = dma.done [#allocation4], 256
    $region37: #{tpu_custom_call.1} parent=1 // pred_fallthru
      _
    %1686 = vsyncpa [#allocation3], 1
    %1687 = vsyncpa [#allocation6], 1
    %1688 = vsyncpa [#allocation4], 1

</llo_original>
